<compile_context>
chip_gen: v7x
topology: tpu7x:2x2x1
jax: 0.10.0
libtpu: 0.0.40
codegen_flags: <defaults>
</compile_context>

<pallas_src>
import math

import jax
import jax.numpy as jnp
from jax import lax
from jax.experimental import pallas as pl
from jax.experimental.pallas import tpu as pltpu

# ---- small, deterministic config (mirrors args) ------------------------------
B = 2            # batch
L = 8            # args.maxlen
H = 32           # args.hidden_units
C = 2            # args.num_context  (== number of experts per layer)
NUM_LAYERS = 2   # args.num_layers
ITEM_NUM = 50
LN_EPS = 1e-8

PROJ_W = 3 * H + C                              # [Wq*scale | Wk | Wv@Wo | Wb] per expert
W_COLS = [(C * C) if i < NUM_LAYERS - 1 else C for i in range(NUM_LAYERS)]
OUT_W = 2 + sum(W_COLS)                         # [pos, neg, w(layer0), ..., w(last)]


# ---- single fused kernel (one grid step == one batch element) -----------------
def _casseq_kernel(x_ref, valid_ref, pos_ref, neg_ref,
                   wproj0_ref, wprojr_ref, bb_ref, ln_ref, out_ref):
    x0 = x_ref[...]                                             # (L, H)
    valid_h = jnp.broadcast_to(valid_ref[...], (L, H))          # hoisted once

    # per-batch causal mask as an additive bias (hoisted; add, not select)
    row = lax.broadcasted_iota(jnp.int32, (L, L), 0)
    col = lax.broadcasted_iota(jnp.int32, (L, L), 1)
    mask_bias = jnp.where(col <= row, 0.0, -1e30).astype(jnp.float32)

    def expert(q, k, v, xc):
        # causal single-head self-attention + residual; Wo already folded into v,
        # 1/sqrt(H) already folded into q.
        s = lax.dot_general(q, k, (((1,), (1,)), ((), ())),
                            preferred_element_type=jnp.float32)
        s = s + mask_bias
        s = s - jnp.max(s, axis=-1, keepdims=True)
        p = jnp.exp(s)
        p = p * pl.reciprocal(jnp.sum(p, axis=-1, keepdims=True), approx=True)
        o = jnp.dot(p, v, preferred_element_type=jnp.float32)
        return (xc + o) * valid_h                               # masked_fill(timeline_mask, 0)

    def branch(bl):
        # BranchingLayer softmax over experts; exact divide (feeds weights_product)
        bl = bl - jnp.max(bl, axis=-1, keepdims=True)
        be = jnp.exp(bl)
        return be / jnp.sum(be, axis=-1, keepdims=True)

    xs = [x0] * C                 # layer-0 context slices are identical by construction
    w_slabs = []                  # branch weights per layer, natural (ctx, exp) order

    for layer in range(NUM_LAYERS):
        is_last = layer == NUM_LAYERS - 1
        branch_w = []             # per context c: (L, C) softmax over experts
        expert_out = []           # per expert e: (L, H)

        if layer == 0:
            # identical expert inputs -> ONE fused MXU projection for all experts
            proj_all = jnp.dot(x0, wproj0_ref[...],
                               preferred_element_type=jnp.float32)   # (L, C*PROJ_W)
            for c in range(C):
                base = c * PROJ_W
                q = proj_all[:, base:base + H]
                k = proj_all[:, base + H:base + 2 * H]
                v = proj_all[:, base + 2 * H:base + 3 * H]
                bl = proj_all[:, base + 3 * H:base + 3 * H + C] + bb_ref[c:c + 1, :]
                branch_w.append(branch(bl))
                expert_out.append(expert(q, k, v, x0))
        else:
            for c in range(C):
                xc = xs[c]
                wi = (layer - 1) * C + c
                proj = jnp.dot(xc, wprojr_ref[wi],
                               preferred_element_type=jnp.float32)   # (L, PROJ_W)
                q = proj[:, 0:H]
                k = proj[:, H:2 * H]
                v = proj[:, 2 * H:3 * H]
                bl = proj[:, 3 * H:3 * H + C] + bb_ref[layer * C + c:layer * C + c + 1, :]
                branch_w.append(branch(bl))
                expert_out.append(expert(q, k, v, xc))

        if is_last:
            w_used = [sum(branch_w) * (1.0 / C)]  # weights.mean(dim=2, keepdim=True)
        else:
            w_used = branch_w
        n_out = len(w_used)

        # mixture: new x[:, co, :] = sum_e w_used[co][:, e] * expert_out[e]
        new_xs = []
        for co in range(n_out):
            wc = w_used[co]
            acc = wc[:, 0:1] * expert_out[0]
            for e in range(1, C):
                acc = acc + wc[:, e:e + 1] * expert_out[e]
            new_xs.append(acc)
        xs = new_xs

        # natural (ctx, exp) order; transpose(-1,-2) happens for free in the wrapper
        w_slabs.append(jnp.concatenate(w_used, axis=-1))        # (L, n_out*C)

    # last LayerNorm(H, eps=1e-8) + pos/neg logit reductions
    f = xs[0]                                                   # (L, H)
    mu = jnp.mean(f, axis=-1, keepdims=True)
    var = jnp.mean((f - mu) ** 2, axis=-1, keepdims=True)
    feats = (f - mu) * lax.rsqrt(var + LN_EPS) * ln_ref[0:1, :] + ln_ref[1:2, :]
    pos_l = jnp.sum(feats * pos_ref[...], axis=-1, keepdims=True)
    neg_l = jnp.sum(feats * neg_ref[...], axis=-1, keepdims=True)

    # single contiguous store of everything the wrapper needs
    out_ref[...] = jnp.concatenate([pos_l, neg_l] + w_slabs, axis=-1)


_row_spec = pl.BlockSpec((None, L, H), lambda b: (b, 0, 0))

CASSEQ_CALL = pl.pallas_call(
    _casseq_kernel,
    out_shape=jax.ShapeDtypeStruct((B, L, OUT_W), jnp.float32),
    grid=(B,),
    in_specs=[
        _row_spec,                                                       # seqs
        pl.BlockSpec((None, L, 1), lambda b: (b, 0, 0)),                 # timeline mask
        _row_spec,                                                       # pos embs
        _row_spec,                                                       # neg embs
        pl.BlockSpec((H, C * PROJ_W), lambda b: (0, 0)),                 # layer-0 fused proj
        pl.BlockSpec(((NUM_LAYERS - 1) * C, H, PROJ_W),
                     lambda b: (0, 0, 0)),                               # layers 1.. proj
        pl.BlockSpec((NUM_LAYERS * C, C), lambda b: (0, 0)),             # branch bias
        pl.BlockSpec((2, H), lambda b: (0, 0)),                          # LN gamma/beta
    ],
    out_specs=pl.BlockSpec((None, L, OUT_W), lambda b: (b, 0, 0)),
    compiler_params=pltpu.CompilerParams(dimension_semantics=("parallel",)),
)


# ---- glue: weights_product (tiny einsum chain, exactly as the module) ---------
def _weights_product(weights_list):
    result = weights_list[0]
    letters = "abcdefg"
    for i in range(len(weights_list) - 1):
        w = weights_list[i + 1]
        for _ in range(i):
            w = jnp.expand_dims(w, 2)
            w = jnp.broadcast_to(w, w.shape[:2] + (C,) + w.shape[3:])
        pre = letters[: i + 2]
        result = jnp.einsum(f"{pre}ij,{pre}jk->{pre}ijk", result, w)
    return result


# ---- parameters ----------------------------------------------------------------
def init_params(key):
    ks = jax.random.split(key, 3)
    item_emb = 0.02 * jax.random.normal(ks[0], (ITEM_NUM + 1, H), jnp.float32)
    item_emb = item_emb.at[0].set(0.0)                          # padding_idx = 0
    pos_emb = 0.02 * jax.random.normal(ks[1], (L, H), jnp.float32)
    layers = []
    for lk in jax.random.split(ks[2], NUM_LAYERS):
        sk = jax.random.split(lk, 5)
        layers.append(dict(
            wb=0.1 * jax.random.normal(sk[0], (C, H, C), jnp.float32),
            bb=jnp.zeros((C, C), jnp.float32),
            wq=0.1 * jax.random.normal(sk[1], (C, H, H), jnp.float32),
            wk=0.1 * jax.random.normal(sk[2], (C, H, H), jnp.float32),
            wv=0.1 * jax.random.normal(sk[3], (C, H, H), jnp.float32),
            wo=0.1 * jax.random.normal(sk[4], (C, H, H), jnp.float32),
        ))
    return dict(item_emb=item_emb, pos_emb=pos_emb, layers=layers,
                ln_gamma=jnp.ones((1, H), jnp.float32),
                ln_beta=jnp.zeros((1, H), jnp.float32))


def _fused_expert_weights(lp):
    # per (layer, expert): (H, 3H + C) = [Wq*scale | Wk | Wv@Wo | Wb]
    scale = 1.0 / math.sqrt(H)
    wq = lp["wq"] * scale                                       # fold score scale into Wq
    wvo = jnp.einsum("chd,cde->che", lp["wv"], lp["wo"])        # fold Wo into Wv
    return jnp.concatenate([wq, lp["wk"], wvo, lp["wb"]], axis=-1)   # (C, H, PROJ_W)


# ---- Casseq.forward -------------------------------------------------------------
@jax.jit
def casseq_forward(params, user_ids, log_seqs, pos_seqs, neg_seqs):
    del user_ids  # only used by the 'ssept' backbone

    # log2feats prologue (embedding gathers stay in plain JAX)
    seqs = params["item_emb"][log_seqs] * (H ** 0.5)            # (B, L, H)
    seqs = seqs + params["pos_emb"][None, :, :]
    # emb_dropout: eval mode (identity)
    valid = (log_seqs != 0).astype(jnp.float32)[..., None]      # ~timeline_mask, (B, L, 1)
    seqs = seqs * valid                                         # masked_fill(timeline_mask, 0)

    pos_embs = params["item_emb"][pos_seqs]                     # (B, L, H)
    neg_embs = params["item_emb"][neg_seqs]                     # (B, L, H)

    # weight prep: fused per-expert projections (scale + Wo folds done here)
    fused = [_fused_expert_weights(lp) for lp in params["layers"]]      # each (C, H, PROJ_W)
    wproj0 = jnp.transpose(fused[0], (1, 0, 2)).reshape(H, C * PROJ_W)  # layer-0 single matmul
    wprojr = jnp.concatenate(fused[1:], axis=0)                         # ((NUM_LAYERS-1)*C, H, PROJ_W)
    bb = jnp.concatenate([lp["bb"] for lp in params["layers"]], axis=0)  # (NUM_LAYERS*C, C)
    ln = jnp.concatenate([params["ln_gamma"], params["ln_beta"]], axis=0)  # (2, H)

    slab = CASSEQ_CALL(seqs, valid, pos_embs, neg_embs, wproj0, wprojr, bb, ln)

    pos_logits = slab[..., 0]                                   # (B, L)
    neg_logits = slab[..., 1]                                   # (B, L)

    # unpack branch weights (natural ctx,exp order) and apply transpose(-1,-2) here
    weights_list = []
    off = 2
    for i in range(NUM_LAYERS):
        n_out = 1 if i == NUM_LAYERS - 1 else C
        w = slab[..., off:off + n_out * C].reshape(B, L, n_out, C)   # (ctx, exp)
        weights_list.append(jnp.swapaxes(w, -1, -2))                 # (exp, ctx)
        off += n_out * C

    context_probs = _weights_product(weights_list).reshape(B, L, -1)
    return pos_logits, neg_logits, context_probs


if __name__ == "__main__":
    key = jax.random.PRNGKey(0)
    pkey, dkey = jax.random.split(key)
    params = init_params(pkey)

    k1, k2, k3, k4 = jax.random.split(dkey, 4)
    log_seqs = jax.random.randint(k1, (B, L), 0, ITEM_NUM + 1)   # 0 = padding token
    pos_seqs = jax.random.randint(k2, (B, L), 1, ITEM_NUM + 1)
    neg_seqs = jax.random.randint(k3, (B, L), 1, ITEM_NUM + 1)
    user_ids = jax.random.randint(k4, (B,), 0, 10)

    pos_logits, neg_logits, context_probs = casseq_forward(
        params, user_ids, log_seqs, pos_seqs, neg_seqs)
    jax.block_until_ready((pos_logits, neg_logits, context_probs))

    assert pos_logits.shape == (B, L)
    assert neg_logits.shape == (B, L)
    assert context_probs.shape == (B, L, C ** NUM_LAYERS)
    assert bool(jnp.all(jnp.isfinite(pos_logits)))
    assert bool(jnp.all(jnp.isfinite(neg_logits)))
    assert bool(jnp.all(jnp.isfinite(context_probs)))

    print("KERNEL_OK")
</pallas_src>

<mosaic_0001>
module attributes {stable_mosaic.version = 11 : i64} {
  func.func @_casseq_kernel(%arg0: i32, %arg1: memref<1x8x32xf32, #tpu.memory_space<vmem>>, %arg2: memref<1x8x1xf32, #tpu.memory_space<vmem>>, %arg3: memref<1x8x32xf32, #tpu.memory_space<vmem>>, %arg4: memref<1x8x32xf32, #tpu.memory_space<vmem>>, %arg5: memref<32x196xf32, #tpu.memory_space<vmem>>, %arg6: memref<2x32x98xf32, #tpu.memory_space<vmem>>, %arg7: memref<4x2xf32, #tpu.memory_space<vmem>>, %arg8: memref<2x32xf32, #tpu.memory_space<vmem>>, %arg9: memref<1x8x8xf32, #tpu.memory_space<vmem>>) attributes {dimension_semantics = [#tpu.dimension_semantics<parallel>], iteration_bounds = array<i64: 2>, scalar_prefetch = 0 : i64, scratch_operands = 0 : i64, tpu.core_type = #tpu.core_type<tc>, window_params = [{transform_indices = @transform_0, window_bounds = array<i64: 1, 8, 32>}, {transform_indices = @transform_1, window_bounds = array<i64: 1, 8, 1>}, {transform_indices = @transform_2, window_bounds = array<i64: 1, 8, 32>}, {transform_indices = @transform_3, window_bounds = array<i64: 1, 8, 32>}, {pipeline_mode = #tpu.pipeline_mode<synchronous>, transform_indices = @transform_4, window_bounds = array<i64: 32, 196>}, {pipeline_mode = #tpu.pipeline_mode<synchronous>, transform_indices = @transform_5, window_bounds = array<i64: 2, 32, 98>}, {pipeline_mode = #tpu.pipeline_mode<synchronous>, transform_indices = @transform_6, window_bounds = array<i64: 4, 2>}, {pipeline_mode = #tpu.pipeline_mode<synchronous>, transform_indices = @transform_7, window_bounds = array<i64: 2, 32>}, {transform_indices = @transform_8, window_bounds = array<i64: 1, 8, 8>}]} {
    %c0 = arith.constant 0 : index
    %c0_0 = arith.constant 0 : index
    %c0_1 = arith.constant 0 : index
    %0 = vector.load %arg1[%c0, %c0_0, %c0_1] : memref<1x8x32xf32, #tpu.memory_space<vmem>>, vector<1x8x32xf32>
    %1 = vector.shape_cast %0 : vector<1x8x32xf32> to vector<8x32xf32>
    %c0_2 = arith.constant 0 : index
    %c0_3 = arith.constant 0 : index
    %c0_4 = arith.constant 0 : index
    %2 = vector.load %arg2[%c0_2, %c0_3, %c0_4] : memref<1x8x1xf32, #tpu.memory_space<vmem>>, vector<1x8x1xf32>
    %3 = vector.shape_cast %2 : vector<1x8x1xf32> to vector<8x1xf32>
    %4 = vector.shape_cast %3 : vector<8x1xf32> to vector<8x1xf32>
    %5 = vector.broadcast %4 : vector<8x1xf32> to vector<8x32xf32>
    %6 = tpu.iota {dimensions = array<i32: 0>} : vector<8x8xi32>
    %7 = tpu.iota {dimensions = array<i32: 1>} : vector<8x8xi32>
    %8 = arith.cmpi sle, %7, %6 : vector<8x8xi32>
    %cst = arith.constant 0.000000e+00 : f32
    %cst_5 = arith.constant -1.000000e+30 : f32
    %9 = vector.broadcast %cst : f32 to vector<8x8xf32>
    %10 = vector.broadcast %cst_5 : f32 to vector<8x8xf32>
    %11 = arith.select %8, %9, %10 : vector<8x8xi1>, vector<8x8xf32>
    %c0_6 = arith.constant 0 : index
    %c0_7 = arith.constant 0 : index
    %12 = vector.load %arg5[%c0_6, %c0_7] : memref<32x196xf32, #tpu.memory_space<vmem>>, vector<32x196xf32>
    %cst_8 = arith.constant dense<0.000000e+00> : vector<8x196xf32>
    %13 = tpu.matmul %1, %12, %cst_8 {dimension_numbers = #tpu.dot_dimension_numbers<[1], [0], [0], [1], [0, 0, 1, 1], [], []>} : vector<8x32xf32>, vector<32x196xf32>, vector<8x196xf32> -> vector<8x196xf32>
    %14 = vector.extract_strided_slice %13 {offsets = [0, 0], sizes = [8, 32], strides = [1, 1]} : vector<8x196xf32> to vector<8x32xf32>
    %15 = vector.extract_strided_slice %13 {offsets = [0, 32], sizes = [8, 32], strides = [1, 1]} : vector<8x196xf32> to vector<8x32xf32>
    %16 = vector.extract_strided_slice %13 {offsets = [0, 64], sizes = [8, 32], strides = [1, 1]} : vector<8x196xf32> to vector<8x32xf32>
    %17 = vector.extract_strided_slice %13 {offsets = [0, 96], sizes = [8, 2], strides = [1, 1]} : vector<8x196xf32> to vector<8x2xf32>
    %c0_9 = arith.constant 0 : index
    %c0_10 = arith.constant 0 : index
    %18 = vector.load %arg7[%c0_9, %c0_10] : memref<4x2xf32, #tpu.memory_space<vmem>>, vector<1x2xf32>
    %19 = vector.broadcast %18 : vector<1x2xf32> to vector<8x2xf32>
    %20 = arith.addf %17, %19 : vector<8x2xf32>
    %cst_11 = arith.constant dense<0xFF800000> : vector<8xf32>
    %21 = vector.multi_reduction <maximumf>, %20, %cst_11 [1] : vector<8x2xf32> to vector<8xf32>
    %22 = vector.shape_cast %21 : vector<8xf32> to vector<8x1xf32>
    %23 = vector.broadcast %22 : vector<8x1xf32> to vector<8x2xf32>
    %24 = arith.subf %20, %23 : vector<8x2xf32>
    %25 = math.exp %24 : vector<8x2xf32>
    %cst_12 = arith.constant dense<0.000000e+00> : vector<8xf32>
    %26 = vector.multi_reduction <add>, %25, %cst_12 [1] : vector<8x2xf32> to vector<8xf32>
    %27 = vector.shape_cast %26 : vector<8xf32> to vector<8x1xf32>
    %28 = vector.broadcast %27 : vector<8x1xf32> to vector<8x2xf32>
    %29 = arith.divf %25, %28 : vector<8x2xf32>
    %cst_13 = arith.constant dense<0.000000e+00> : vector<8x8xf32>
    %30 = tpu.matmul %14, %15, %cst_13 {dimension_numbers = #tpu.dot_dimension_numbers<[1], [1], [0], [0], [0, 0, 1, 0], [], []>} : vector<8x32xf32>, vector<8x32xf32>, vector<8x8xf32> -> vector<8x8xf32>
    %31 = arith.addf %30, %11 : vector<8x8xf32>
    %cst_14 = arith.constant dense<0xFF800000> : vector<8xf32>
    %32 = vector.multi_reduction <maximumf>, %31, %cst_14 [1] : vector<8x8xf32> to vector<8xf32>
    %33 = vector.shape_cast %32 : vector<8xf32> to vector<8x1xf32>
    %34 = vector.broadcast %33 : vector<8x1xf32> to vector<8x8xf32>
    %35 = arith.subf %31, %34 : vector<8x8xf32>
    %36 = math.exp %35 : vector<8x8xf32>
    %cst_15 = arith.constant dense<0.000000e+00> : vector<8xf32>
    %37 = vector.multi_reduction <add>, %36, %cst_15 [1] : vector<8x8xf32> to vector<8xf32>
    %38 = vector.shape_cast %37 : vector<8xf32> to vector<8x1xf32>
    %39 = tpu.reciprocal %38 {approx = true} : vector<8x1xf32> -> vector<8x1xf32>
    %40 = vector.broadcast %39 : vector<8x1xf32> to vector<8x8xf32>
    %41 = arith.mulf %36, %40 : vector<8x8xf32>
    %cst_16 = arith.constant dense<0.000000e+00> : vector<8x32xf32>
    %42 = tpu.matmul %41, %16, %cst_16 {dimension_numbers = #tpu.dot_dimension_numbers<[1], [0], [0], [1], [0, 0, 1, 1], [], []>} : vector<8x8xf32>, vector<8x32xf32>, vector<8x32xf32> -> vector<8x32xf32>
    %43 = arith.addf %1, %42 : vector<8x32xf32>
    %44 = arith.mulf %43, %5 : vector<8x32xf32>
    %45 = vector.extract_strided_slice %13 {offsets = [0, 98], sizes = [8, 32], strides = [1, 1]} : vector<8x196xf32> to vector<8x32xf32>
    %46 = vector.extract_strided_slice %13 {offsets = [0, 130], sizes = [8, 32], strides = [1, 1]} : vector<8x196xf32> to vector<8x32xf32>
    %47 = vector.extract_strided_slice %13 {offsets = [0, 162], sizes = [8, 32], strides = [1, 1]} : vector<8x196xf32> to vector<8x32xf32>
    %48 = vector.extract_strided_slice %13 {offsets = [0, 194], sizes = [8, 2], strides = [1, 1]} : vector<8x196xf32> to vector<8x2xf32>
    %c1 = arith.constant 1 : index
    %c0_17 = arith.constant 0 : index
    %49 = vector.load %arg7[%c1, %c0_17] : memref<4x2xf32, #tpu.memory_space<vmem>>, vector<1x2xf32>
    %50 = vector.broadcast %49 : vector<1x2xf32> to vector<8x2xf32>
    %51 = arith.addf %48, %50 : vector<8x2xf32>
    %cst_18 = arith.constant dense<0xFF800000> : vector<8xf32>
    %52 = vector.multi_reduction <maximumf>, %51, %cst_18 [1] : vector<8x2xf32> to vector<8xf32>
    %53 = vector.shape_cast %52 : vector<8xf32> to vector<8x1xf32>
    %54 = vector.broadcast %53 : vector<8x1xf32> to vector<8x2xf32>
    %55 = arith.subf %51, %54 : vector<8x2xf32>
    %56 = math.exp %55 : vector<8x2xf32>
    %cst_19 = arith.constant dense<0.000000e+00> : vector<8xf32>
    %57 = vector.multi_reduction <add>, %56, %cst_19 [1] : vector<8x2xf32> to vector<8xf32>
    %58 = vector.shape_cast %57 : vector<8xf32> to vector<8x1xf32>
    %59 = vector.broadcast %58 : vector<8x1xf32> to vector<8x2xf32>
    %60 = arith.divf %56, %59 : vector<8x2xf32>
    %cst_20 = arith.constant dense<0.000000e+00> : vector<8x8xf32>
    %61 = tpu.matmul %45, %46, %cst_20 {dimension_numbers = #tpu.dot_dimension_numbers<[1], [1], [0], [0], [0, 0, 1, 0], [], []>} : vector<8x32xf32>, vector<8x32xf32>, vector<8x8xf32> -> vector<8x8xf32>
    %62 = arith.addf %61, %11 : vector<8x8xf32>
    %cst_21 = arith.constant dense<0xFF800000> : vector<8xf32>
    %63 = vector.multi_reduction <maximumf>, %62, %cst_21 [1] : vector<8x8xf32> to vector<8xf32>
    %64 = vector.shape_cast %63 : vector<8xf32> to vector<8x1xf32>
    %65 = vector.broadcast %64 : vector<8x1xf32> to vector<8x8xf32>
    %66 = arith.subf %62, %65 : vector<8x8xf32>
    %67 = math.exp %66 : vector<8x8xf32>
    %cst_22 = arith.constant dense<0.000000e+00> : vector<8xf32>
    %68 = vector.multi_reduction <add>, %67, %cst_22 [1] : vector<8x8xf32> to vector<8xf32>
    %69 = vector.shape_cast %68 : vector<8xf32> to vector<8x1xf32>
    %70 = tpu.reciprocal %69 {approx = true} : vector<8x1xf32> -> vector<8x1xf32>
    %71 = vector.broadcast %70 : vector<8x1xf32> to vector<8x8xf32>
    %72 = arith.mulf %67, %71 : vector<8x8xf32>
    %cst_23 = arith.constant dense<0.000000e+00> : vector<8x32xf32>
    %73 = tpu.matmul %72, %47, %cst_23 {dimension_numbers = #tpu.dot_dimension_numbers<[1], [0], [0], [1], [0, 0, 1, 1], [], []>} : vector<8x8xf32>, vector<8x32xf32>, vector<8x32xf32> -> vector<8x32xf32>
    %74 = arith.addf %1, %73 : vector<8x32xf32>
    %75 = arith.mulf %74, %5 : vector<8x32xf32>
    %76 = vector.extract_strided_slice %29 {offsets = [0, 0], sizes = [8, 1], strides = [1, 1]} : vector<8x2xf32> to vector<8x1xf32>
    %77 = vector.broadcast %76 : vector<8x1xf32> to vector<8x32xf32>
    %78 = arith.mulf %77, %44 : vector<8x32xf32>
    %79 = vector.extract_strided_slice %29 {offsets = [0, 1], sizes = [8, 1], strides = [1, 1]} : vector<8x2xf32> to vector<8x1xf32>
    %80 = vector.broadcast %79 : vector<8x1xf32> to vector<8x32xf32>
    %81 = arith.mulf %80, %75 : vector<8x32xf32>
    %82 = arith.addf %78, %81 : vector<8x32xf32>
    %83 = vector.extract_strided_slice %60 {offsets = [0, 0], sizes = [8, 1], strides = [1, 1]} : vector<8x2xf32> to vector<8x1xf32>
    %84 = vector.broadcast %83 : vector<8x1xf32> to vector<8x32xf32>
    %85 = arith.mulf %84, %44 : vector<8x32xf32>
    %86 = vector.extract_strided_slice %60 {offsets = [0, 1], sizes = [8, 1], strides = [1, 1]} : vector<8x2xf32> to vector<8x1xf32>
    %87 = vector.broadcast %86 : vector<8x1xf32> to vector<8x32xf32>
    %88 = arith.mulf %87, %75 : vector<8x32xf32>
    %89 = arith.addf %85, %88 : vector<8x32xf32>
    %90 = tpu.concatenate %29, %60 in 1 : vector<8x2xf32>, vector<8x2xf32> -> vector<8x4xf32>
    %c0_24 = arith.constant 0 : index
    %c0_25 = arith.constant 0 : index
    %c0_26 = arith.constant 0 : index
    %91 = vector.load %arg6[%c0_24, %c0_25, %c0_26] : memref<2x32x98xf32, #tpu.memory_space<vmem>>, vector<1x32x98xf32>
    %92 = vector.shape_cast %91 : vector<1x32x98xf32> to vector<32x98xf32>
    %cst_27 = arith.constant dense<0.000000e+00> : vector<8x98xf32>
    %93 = tpu.matmul %82, %92, %cst_27 {dimension_numbers = #tpu.dot_dimension_numbers<[1], [0], [0], [1], [0, 0, 1, 1], [], []>} : vector<8x32xf32>, vector<32x98xf32>, vector<8x98xf32> -> vector<8x98xf32>
    %94 = vector.extract_strided_slice %93 {offsets = [0, 0], sizes = [8, 32], strides = [1, 1]} : vector<8x98xf32> to vector<8x32xf32>
    %95 = vector.extract_strided_slice %93 {offsets = [0, 32], sizes = [8, 32], strides = [1, 1]} : vector<8x98xf32> to vector<8x32xf32>
    %96 = vector.extract_strided_slice %93 {offsets = [0, 64], sizes = [8, 32], strides = [1, 1]} : vector<8x98xf32> to vector<8x32xf32>
    %97 = vector.extract_strided_slice %93 {offsets = [0, 96], sizes = [8, 2], strides = [1, 1]} : vector<8x98xf32> to vector<8x2xf32>
    %c2 = arith.constant 2 : index
    %c0_28 = arith.constant 0 : index
    %98 = vector.load %arg7[%c2, %c0_28] : memref<4x2xf32, #tpu.memory_space<vmem>>, vector<1x2xf32>
    %99 = vector.broadcast %98 : vector<1x2xf32> to vector<8x2xf32>
    %100 = arith.addf %97, %99 : vector<8x2xf32>
    %cst_29 = arith.constant dense<0xFF800000> : vector<8xf32>
    %101 = vector.multi_reduction <maximumf>, %100, %cst_29 [1] : vector<8x2xf32> to vector<8xf32>
    %102 = vector.shape_cast %101 : vector<8xf32> to vector<8x1xf32>
    %103 = vector.broadcast %102 : vector<8x1xf32> to vector<8x2xf32>
    %104 = arith.subf %100, %103 : vector<8x2xf32>
    %105 = math.exp %104 : vector<8x2xf32>
    %cst_30 = arith.constant dense<0.000000e+00> : vector<8xf32>
    %106 = vector.multi_reduction <add>, %105, %cst_30 [1] : vector<8x2xf32> to vector<8xf32>
    %107 = vector.shape_cast %106 : vector<8xf32> to vector<8x1xf32>
    %108 = vector.broadcast %107 : vector<8x1xf32> to vector<8x2xf32>
    %109 = arith.divf %105, %108 : vector<8x2xf32>
    %cst_31 = arith.constant dense<0.000000e+00> : vector<8x8xf32>
    %110 = tpu.matmul %94, %95, %cst_31 {dimension_numbers = #tpu.dot_dimension_numbers<[1], [1], [0], [0], [0, 0, 1, 0], [], []>} : vector<8x32xf32>, vector<8x32xf32>, vector<8x8xf32> -> vector<8x8xf32>
    %111 = arith.addf %110, %11 : vector<8x8xf32>
    %cst_32 = arith.constant dense<0xFF800000> : vector<8xf32>
    %112 = vector.multi_reduction <maximumf>, %111, %cst_32 [1] : vector<8x8xf32> to vector<8xf32>
    %113 = vector.shape_cast %112 : vector<8xf32> to vector<8x1xf32>
    %114 = vector.broadcast %113 : vector<8x1xf32> to vector<8x8xf32>
    %115 = arith.subf %111, %114 : vector<8x8xf32>
    %116 = math.exp %115 : vector<8x8xf32>
    %cst_33 = arith.constant dense<0.000000e+00> : vector<8xf32>
    %117 = vector.multi_reduction <add>, %116, %cst_33 [1] : vector<8x8xf32> to vector<8xf32>
    %118 = vector.shape_cast %117 : vector<8xf32> to vector<8x1xf32>
    %119 = tpu.reciprocal %118 {approx = true} : vector<8x1xf32> -> vector<8x1xf32>
    %120 = vector.broadcast %119 : vector<8x1xf32> to vector<8x8xf32>
    %121 = arith.mulf %116, %120 : vector<8x8xf32>
    %cst_34 = arith.constant dense<0.000000e+00> : vector<8x32xf32>
    %122 = tpu.matmul %121, %96, %cst_34 {dimension_numbers = #tpu.dot_dimension_numbers<[1], [0], [0], [1], [0, 0, 1, 1], [], []>} : vector<8x8xf32>, vector<8x32xf32>, vector<8x32xf32> -> vector<8x32xf32>
    %123 = arith.addf %82, %122 : vector<8x32xf32>
    %124 = arith.mulf %123, %5 : vector<8x32xf32>
    %c1_35 = arith.constant 1 : index
    %c0_36 = arith.constant 0 : index
    %c0_37 = arith.constant 0 : index
    %125 = vector.load %arg6[%c1_35, %c0_36, %c0_37] : memref<2x32x98xf32, #tpu.memory_space<vmem>>, vector<1x32x98xf32>
    %126 = vector.shape_cast %125 : vector<1x32x98xf32> to vector<32x98xf32>
    %cst_38 = arith.constant dense<0.000000e+00> : vector<8x98xf32>
    %127 = tpu.matmul %89, %126, %cst_38 {dimension_numbers = #tpu.dot_dimension_numbers<[1], [0], [0], [1], [0, 0, 1, 1], [], []>} : vector<8x32xf32>, vector<32x98xf32>, vector<8x98xf32> -> vector<8x98xf32>
    %128 = vector.extract_strided_slice %127 {offsets = [0, 0], sizes = [8, 32], strides = [1, 1]} : vector<8x98xf32> to vector<8x32xf32>
    %129 = vector.extract_strided_slice %127 {offsets = [0, 32], sizes = [8, 32], strides = [1, 1]} : vector<8x98xf32> to vector<8x32xf32>
    %130 = vector.extract_strided_slice %127 {offsets = [0, 64], sizes = [8, 32], strides = [1, 1]} : vector<8x98xf32> to vector<8x32xf32>
    %131 = vector.extract_strided_slice %127 {offsets = [0, 96], sizes = [8, 2], strides = [1, 1]} : vector<8x98xf32> to vector<8x2xf32>
    %c3 = arith.constant 3 : index
    %c0_39 = arith.constant 0 : index
    %132 = vector.load %arg7[%c3, %c0_39] : memref<4x2xf32, #tpu.memory_space<vmem>>, vector<1x2xf32>
    %133 = vector.broadcast %132 : vector<1x2xf32> to vector<8x2xf32>
    %134 = arith.addf %131, %133 : vector<8x2xf32>
    %cst_40 = arith.constant dense<0xFF800000> : vector<8xf32>
    %135 = vector.multi_reduction <maximumf>, %134, %cst_40 [1] : vector<8x2xf32> to vector<8xf32>
    %136 = vector.shape_cast %135 : vector<8xf32> to vector<8x1xf32>
    %137 = vector.broadcast %136 : vector<8x1xf32> to vector<8x2xf32>
    %138 = arith.subf %134, %137 : vector<8x2xf32>
    %139 = math.exp %138 : vector<8x2xf32>
    %cst_41 = arith.constant dense<0.000000e+00> : vector<8xf32>
    %140 = vector.multi_reduction <add>, %139, %cst_41 [1] : vector<8x2xf32> to vector<8xf32>
    %141 = vector.shape_cast %140 : vector<8xf32> to vector<8x1xf32>
    %142 = vector.broadcast %141 : vector<8x1xf32> to vector<8x2xf32>
    %143 = arith.divf %139, %142 : vector<8x2xf32>
    %cst_42 = arith.constant dense<0.000000e+00> : vector<8x8xf32>
    %144 = tpu.matmul %128, %129, %cst_42 {dimension_numbers = #tpu.dot_dimension_numbers<[1], [1], [0], [0], [0, 0, 1, 0], [], []>} : vector<8x32xf32>, vector<8x32xf32>, vector<8x8xf32> -> vector<8x8xf32>
    %145 = arith.addf %144, %11 : vector<8x8xf32>
    %cst_43 = arith.constant dense<0xFF800000> : vector<8xf32>
    %146 = vector.multi_reduction <maximumf>, %145, %cst_43 [1] : vector<8x8xf32> to vector<8xf32>
    %147 = vector.shape_cast %146 : vector<8xf32> to vector<8x1xf32>
    %148 = vector.broadcast %147 : vector<8x1xf32> to vector<8x8xf32>
    %149 = arith.subf %145, %148 : vector<8x8xf32>
    %150 = math.exp %149 : vector<8x8xf32>
    %cst_44 = arith.constant dense<0.000000e+00> : vector<8xf32>
    %151 = vector.multi_reduction <add>, %150, %cst_44 [1] : vector<8x8xf32> to vector<8xf32>
    %152 = vector.shape_cast %151 : vector<8xf32> to vector<8x1xf32>
    %153 = tpu.reciprocal %152 {approx = true} : vector<8x1xf32> -> vector<8x1xf32>
    %154 = vector.broadcast %153 : vector<8x1xf32> to vector<8x8xf32>
    %155 = arith.mulf %150, %154 : vector<8x8xf32>
    %cst_45 = arith.constant dense<0.000000e+00> : vector<8x32xf32>
    %156 = tpu.matmul %155, %130, %cst_45 {dimension_numbers = #tpu.dot_dimension_numbers<[1], [0], [0], [1], [0, 0, 1, 1], [], []>} : vector<8x8xf32>, vector<8x32xf32>, vector<8x32xf32> -> vector<8x32xf32>
    %157 = arith.addf %89, %156 : vector<8x32xf32>
    %158 = arith.mulf %157, %5 : vector<8x32xf32>
    %cst_46 = arith.constant 0.000000e+00 : f32
    %159 = vector.broadcast %cst_46 : f32 to vector<8x2xf32>
    %160 = arith.addf %159, %109 : vector<8x2xf32>
    %161 = arith.addf %160, %143 : vector<8x2xf32>
    %cst_47 = arith.constant 5.000000e-01 : f32
    %162 = vector.broadcast %cst_47 : f32 to vector<8x2xf32>
    %163 = arith.mulf %161, %162 : vector<8x2xf32>
    %164 = vector.extract_strided_slice %163 {offsets = [0, 0], sizes = [8, 1], strides = [1, 1]} : vector<8x2xf32> to vector<8x1xf32>
    %165 = vector.broadcast %164 : vector<8x1xf32> to vector<8x32xf32>
    %166 = arith.mulf %165, %124 : vector<8x32xf32>
    %167 = vector.extract_strided_slice %163 {offsets = [0, 1], sizes = [8, 1], strides = [1, 1]} : vector<8x2xf32> to vector<8x1xf32>
    %168 = vector.broadcast %167 : vector<8x1xf32> to vector<8x32xf32>
    %169 = arith.mulf %168, %158 : vector<8x32xf32>
    %170 = arith.addf %166, %169 : vector<8x32xf32>
    %cst_48 = arith.constant dense<0.000000e+00> : vector<8xf32>
    %171 = vector.multi_reduction <add>, %170, %cst_48 [1] : vector<8x32xf32> to vector<8xf32>
    %172 = vector.shape_cast %171 : vector<8xf32> to vector<8x1xf32>
    %cst_49 = arith.constant 3.200000e+01 : f32
    %173 = vector.broadcast %cst_49 : f32 to vector<8x1xf32>
    %174 = arith.divf %172, %173 : vector<8x1xf32>
    %175 = vector.broadcast %174 : vector<8x1xf32> to vector<8x32xf32>
    %176 = arith.subf %170, %175 : vector<8x32xf32>
    %177 = arith.mulf %176, %176 : vector<8x32xf32>
    %cst_50 = arith.constant dense<0.000000e+00> : vector<8xf32>
    %178 = vector.multi_reduction <add>, %177, %cst_50 [1] : vector<8x32xf32> to vector<8xf32>
    %179 = vector.shape_cast %178 : vector<8xf32> to vector<8x1xf32>
    %cst_51 = arith.constant 3.200000e+01 : f32
    %180 = vector.broadcast %cst_51 : f32 to vector<8x1xf32>
    %181 = arith.divf %179, %180 : vector<8x1xf32>
    %182 = vector.broadcast %174 : vector<8x1xf32> to vector<8x32xf32>
    %183 = arith.subf %170, %182 : vector<8x32xf32>
    %cst_52 = arith.constant 9.99999993E-9 : f32
    %184 = vector.broadcast %cst_52 : f32 to vector<8x1xf32>
    %185 = arith.addf %181, %184 : vector<8x1xf32>
    %186 = math.rsqrt %185 : vector<8x1xf32>
    %187 = vector.broadcast %186 : vector<8x1xf32> to vector<8x32xf32>
    %188 = arith.mulf %183, %187 : vector<8x32xf32>
    %c0_53 = arith.constant 0 : index
    %c0_54 = arith.constant 0 : index
    %189 = vector.load %arg8[%c0_53, %c0_54] : memref<2x32xf32, #tpu.memory_space<vmem>>, vector<1x32xf32>
    %190 = vector.broadcast %189 : vector<1x32xf32> to vector<8x32xf32>
    %191 = arith.mulf %188, %190 : vector<8x32xf32>
    %c1_55 = arith.constant 1 : index
    %c0_56 = arith.constant 0 : index
    %192 = vector.load %arg8[%c1_55, %c0_56] : memref<2x32xf32, #tpu.memory_space<vmem>>, vector<1x32xf32>
    %193 = vector.broadcast %192 : vector<1x32xf32> to vector<8x32xf32>
    %194 = arith.addf %191, %193 : vector<8x32xf32>
    %c0_57 = arith.constant 0 : index
    %c0_58 = arith.constant 0 : index
    %c0_59 = arith.constant 0 : index
    %195 = vector.load %arg3[%c0_57, %c0_58, %c0_59] : memref<1x8x32xf32, #tpu.memory_space<vmem>>, vector<1x8x32xf32>
    %196 = vector.shape_cast %195 : vector<1x8x32xf32> to vector<8x32xf32>
    %197 = arith.mulf %194, %196 : vector<8x32xf32>
    %cst_60 = arith.constant dense<0.000000e+00> : vector<8xf32>
    %198 = vector.multi_reduction <add>, %197, %cst_60 [1] : vector<8x32xf32> to vector<8xf32>
    %199 = vector.shape_cast %198 : vector<8xf32> to vector<8x1xf32>
    %c0_61 = arith.constant 0 : index
    %c0_62 = arith.constant 0 : index
    %c0_63 = arith.constant 0 : index
    %200 = vector.load %arg4[%c0_61, %c0_62, %c0_63] : memref<1x8x32xf32, #tpu.memory_space<vmem>>, vector<1x8x32xf32>
    %201 = vector.shape_cast %200 : vector<1x8x32xf32> to vector<8x32xf32>
    %202 = arith.mulf %194, %201 : vector<8x32xf32>
    %cst_64 = arith.constant dense<0.000000e+00> : vector<8xf32>
    %203 = vector.multi_reduction <add>, %202, %cst_64 [1] : vector<8x32xf32> to vector<8xf32>
    %204 = vector.shape_cast %203 : vector<8xf32> to vector<8x1xf32>
    %205 = tpu.concatenate %199, %204, %90, %163 in 1 : vector<8x1xf32>, vector<8x1xf32>, vector<8x4xf32>, vector<8x2xf32> -> vector<8x8xf32>
    %c0_65 = arith.constant 0 : index
    %c0_66 = arith.constant 0 : index
    %c0_67 = arith.constant 0 : index
    %206 = vector.load %arg9[%c0_65, %c0_66, %c0_67] : memref<1x8x8xf32, #tpu.memory_space<vmem>>, vector<1x8x8xf32>
    %207 = vector.shape_cast %206 : vector<1x8x8xf32> to vector<8x8xf32>
    %208 = vector.shape_cast %205 : vector<8x8xf32> to vector<1x8x8xf32>
    tpu.vector_store %arg9[%c0_65, %c0_66, %c0_67], %208 {strides = array<i32>} : memref<1x8x8xf32, #tpu.memory_space<vmem>>, vector<1x8x8xf32>,
    return
  }
  func.func @transform_0(%arg0: i32) -> (i32, i32, i32) {
    %c0_i32 = arith.constant 0 : i32
    %c0_i32_0 = arith.constant 0 : i32
    %c0_i32_1 = arith.constant 0 : i32
    return %arg0, %c0_i32, %c0_i32_0 : i32, i32, i32
  }
  func.func @transform_1(%arg0: i32) -> (i32, i32, i32) {
    %c0_i32 = arith.constant 0 : i32
    %c0_i32_0 = arith.constant 0 : i32
    %c0_i32_1 = arith.constant 0 : i32
    return %arg0, %c0_i32, %c0_i32_0 : i32, i32, i32
  }
  func.func @transform_2(%arg0: i32) -> (i32, i32, i32) {
    %c0_i32 = arith.constant 0 : i32
    %c0_i32_0 = arith.constant 0 : i32
    %c0_i32_1 = arith.constant 0 : i32
    return %arg0, %c0_i32, %c0_i32_0 : i32, i32, i32
  }
  func.func @transform_3(%arg0: i32) -> (i32, i32, i32) {
    %c0_i32 = arith.constant 0 : i32
    %c0_i32_0 = arith.constant 0 : i32
    %c0_i32_1 = arith.constant 0 : i32
    return %arg0, %c0_i32, %c0_i32_0 : i32, i32, i32
  }
  func.func @transform_4(%arg0: i32) -> (i32, i32) {
    %c0_i32 = arith.constant 0 : i32
    %c0_i32_0 = arith.constant 0 : i32
    %c0_i32_1 = arith.constant 0 : i32
    return %c0_i32, %c0_i32_0 : i32, i32
  }
  func.func @transform_5(%arg0: i32) -> (i32, i32, i32) {
    %c0_i32 = arith.constant 0 : i32
    %c0_i32_0 = arith.constant 0 : i32
    %c0_i32_1 = arith.constant 0 : i32
    %c0_i32_2 = arith.constant 0 : i32
    return %c0_i32, %c0_i32_0, %c0_i32_1 : i32, i32, i32
  }
  func.func @transform_6(%arg0: i32) -> (i32, i32) {
    %c0_i32 = arith.constant 0 : i32
    %c0_i32_0 = arith.constant 0 : i32
    %c0_i32_1 = arith.constant 0 : i32
    return %c0_i32, %c0_i32_0 : i32, i32
  }
  func.func @transform_7(%arg0: i32) -> (i32, i32) {
    %c0_i32 = arith.constant 0 : i32
    %c0_i32_0 = arith.constant 0 : i32
    %c0_i32_1 = arith.constant 0 : i32
    return %c0_i32, %c0_i32_0 : i32, i32
  }
  func.func @transform_8(%arg0: i32) -> (i32, i32, i32) {
    %c0_i32 = arith.constant 0 : i32
    %c0_i32_0 = arith.constant 0 : i32
    %c0_i32_1 = arith.constant 0 : i32
    return %arg0, %c0_i32, %c0_i32_0 : i32, i32, i32
  }
}

</mosaic_0001>

<llo_original>
// kernel: casseq_forward.1
$region0: #{casseq_forward.1}
  #allocation0 [shape = 'u32[]', space=smem, size = 0x4, offset = 0x4, fixed_abs, tag = 'smem constant byte address 0x4 - core index']
  #allocation1 [shape = 'u32[144,128]{1,0:T(1,128)}', space=vmem, size = 0x12000, scoped, tag = 'internal scratch']
  %s0 = inlined_call_operand.vmem [shape: f32[2,8,32], index: 0, kind: input, shape index: {}]
  %s1 = inlined_call_operand.vmem [shape: f32[2,8,1], index: 1, kind: input, shape index: {}]
  %s2 = inlined_call_operand.vmem [shape: f32[2,8,32], index: 2, kind: input, shape index: {}]
  %s3 = inlined_call_operand.vmem [shape: f32[2,8,32], index: 3, kind: input, shape index: {}]
  %s4 = inlined_call_operand.vmem [shape: f32[32,196], index: 4, kind: input, shape index: {}]
  %s5 = inlined_call_operand.vmem [shape: f32[2,32,98], index: 5, kind: input, shape index: {}]
  %s6 = inlined_call_operand.vmem [shape: f32[4,2], index: 6, kind: input, shape index: {}]
  %s7 = inlined_call_operand.vmem [shape: f32[2,32], index: 7, kind: input, shape index: {}]
  %s8 = inlined_call_operand.vmem [shape: f32[2,8,8], index: 8, kind: output, shape index: {}]
  %s9 = sld [smem:[#allocation0]]
  $region65: #{casseq_forward.1} parent=0
    _
  %s11 = ssub.s32 1, %s9
  %s12 = scalar_select 0, %s11, %s9
  loop: start=0, step=1, limit=4
  $region2: #{casseq_forward.1} parent=0 // loop_pre_header
    _
  $region3: #{casseq_forward.1} parent=0 // loop_header
    %s14 = sphi 0, %s18
    %p15 = scmp.ge.s32.totalorder %s14, 4
    %s24 = sphi 0, %s26
    %s27 = sphi 0, %s24
    %s28 = sphi 0, %s27
    %s44 = sphi 0, %s28
    %s50 = sphi 0, %s52
    %s53 = sphi 0, %s50
    %s54 = sphi 0, %s53
    %s70 = sphi 0, %s54
    %s76 = sphi 0, %s78
    %s79 = sphi 0, %s76
    %s80 = sphi 0, %s79
    %s96 = sphi 0, %s80
    %s102 = sphi 0, %s104
    %s105 = sphi 0, %s102
    %s106 = sphi 0, %s105
    %s122 = sphi 0, %s106
    %s126 = sphi 0, %s126
    %s128 = sphi 0, %s126
    %s129 = sphi 0, %s128
    %s143 = sphi 0, %s129
    %s147 = sphi 0, %s147
    %s149 = sphi 0, %s147
    %s150 = sphi 0, %s149
    %s164 = sphi 0, %s150
    %s168 = sphi 0, %s168
    %s170 = sphi 0, %s168
    %s171 = sphi 0, %s170
    %s185 = sphi 0, %s171
    %s189 = sphi 0, %s189
    %s191 = sphi 0, %s189
    %s192 = sphi 0, %s191
    %s206 = sphi 0, %s192
    %s212 = sphi 0, %s214
    %s215 = sphi 0, %s212
    %s216 = sphi 0, %s215
    %s232 = sphi 0, %s216
  $region4: #{casseq_forward.1} parent=0 // loop_header_branch
    %17 = sbr.rel (%p15) target = $region8
  $region5: #{casseq_forward.1} parent=0 // loop_body
    %s19 = ssub.s32 %s14, 1
    %s20 = ssub.s32 %s14, 2
    %s21 = sadd.s32 %s14, 1
    %s22 = ssub.s32 %s14, %s21
    %p23 = scmp.eq.s32.totalorder %s22, 0
    %s25 = sadd.s32 %s24, 1
    %s26 = scalar_select %p23, %s24, %s25
    %p29 = pneg %p23
    %p30 = scmp.eq.s32.totalorder %s14, 1
    %p31 = por %p29, %p30
    %p32 = scmp.ne.s32.totalorder %s24, %s27
    %p33 = scmp.eq.s32.totalorder %s14, 0
    %p34 = por %p32, %p33
    %p35 = scmp.ne.s32.totalorder %s24, %s27
    %p36 = scmp.eq.s32.totalorder %s19, 1
    %p37 = por %p35, %p36
    %p38 = scmp.ne.s32.totalorder %s27, %s28
    %p39 = scmp.eq.s32.totalorder %s19, 0
    %p40 = por %p38, %p39
    %p41 = scmp.ne.s32.totalorder %s27, %s28
    %p42 = scmp.eq.s32.totalorder %s20, 1
    %p43 = por %p41, %p42
    %p45 = scmp.ne.s32.totalorder %s28, %s44
    %p46 = scmp.eq.s32.totalorder %s20, 0
    %p47 = por %p45, %p46
    %s48 = ssub.s32 %s14, %s21
    %p49 = scmp.eq.s32.totalorder %s48, 0
    %s51 = sadd.s32 %s50, 1
    %s52 = scalar_select %p49, %s50, %s51
    %p55 = pneg %p49
    %p56 = scmp.eq.s32.totalorder %s14, 1
    %p57 = por %p55, %p56
    %p58 = scmp.ne.s32.totalorder %s50, %s53
    %p59 = scmp.eq.s32.totalorder %s14, 0
    %p60 = por %p58, %p59
    %p61 = scmp.ne.s32.totalorder %s50, %s53
    %p62 = scmp.eq.s32.totalorder %s19, 1
    %p63 = por %p61, %p62
    %p64 = scmp.ne.s32.totalorder %s53, %s54
    %p65 = scmp.eq.s32.totalorder %s19, 0
    %p66 = por %p64, %p65
    %p67 = scmp.ne.s32.totalorder %s53, %s54
    %p68 = scmp.eq.s32.totalorder %s20, 1
    %p69 = por %p67, %p68
    %p71 = scmp.ne.s32.totalorder %s54, %s70
    %p72 = scmp.eq.s32.totalorder %s20, 0
    %p73 = por %p71, %p72
    %s74 = ssub.s32 %s14, %s21
    %p75 = scmp.eq.s32.totalorder %s74, 0
    %s77 = sadd.s32 %s76, 1
    %s78 = scalar_select %p75, %s76, %s77
    %p81 = pneg %p75
    %p82 = scmp.eq.s32.totalorder %s14, 1
    %p83 = por %p81, %p82
    %p84 = scmp.ne.s32.totalorder %s76, %s79
    %p85 = scmp.eq.s32.totalorder %s14, 0
    %p86 = por %p84, %p85
    %p87 = scmp.ne.s32.totalorder %s76, %s79
    %p88 = scmp.eq.s32.totalorder %s19, 1
    %p89 = por %p87, %p88
    %p90 = scmp.ne.s32.totalorder %s79, %s80
    %p91 = scmp.eq.s32.totalorder %s19, 0
    %p92 = por %p90, %p91
    %p93 = scmp.ne.s32.totalorder %s79, %s80
    %p94 = scmp.eq.s32.totalorder %s20, 1
    %p95 = por %p93, %p94
    %p97 = scmp.ne.s32.totalorder %s80, %s96
    %p98 = scmp.eq.s32.totalorder %s20, 0
    %p99 = por %p97, %p98
    %s100 = ssub.s32 %s14, %s21
    %p101 = scmp.eq.s32.totalorder %s100, 0
    %s103 = sadd.s32 %s102, 1
    %s104 = scalar_select %p101, %s102, %s103
    %p107 = pneg %p101
    %p108 = scmp.eq.s32.totalorder %s14, 1
    %p109 = por %p107, %p108
    %p110 = scmp.ne.s32.totalorder %s102, %s105
    %p111 = scmp.eq.s32.totalorder %s14, 0
    %p112 = por %p110, %p111
    %p113 = scmp.ne.s32.totalorder %s102, %s105
    %p114 = scmp.eq.s32.totalorder %s19, 1
    %p115 = por %p113, %p114
    %p116 = scmp.ne.s32.totalorder %s105, %s106
    %p117 = scmp.eq.s32.totalorder %s19, 0
    %p118 = por %p116, %p117
    %p119 = scmp.ne.s32.totalorder %s105, %s106
    %p120 = scmp.eq.s32.totalorder %s20, 1
    %p121 = por %p119, %p120
    %p123 = scmp.ne.s32.totalorder %s106, %s122
    %p124 = scmp.eq.s32.totalorder %s20, 0
    %p125 = por %p123, %p124
    %s127 = sadd.s32 %s126, 1
    %p130 = scmp.eq.s32.totalorder %s14, 1
    %p131 = scmp.ne.s32.totalorder %s126, %s128
    %p132 = scmp.eq.s32.totalorder %s14, 0
    %p133 = por %p131, %p132
    %p134 = scmp.ne.s32.totalorder %s126, %s128
    %p135 = scmp.eq.s32.totalorder %s19, 1
    %p136 = por %p134, %p135
    %p137 = scmp.ne.s32.totalorder %s128, %s129
    %p138 = scmp.eq.s32.totalorder %s19, 0
    %p139 = por %p137, %p138
    %p140 = scmp.ne.s32.totalorder %s128, %s129
    %p141 = scmp.eq.s32.totalorder %s20, 1
    %p142 = por %p140, %p141
    %p144 = scmp.ne.s32.totalorder %s129, %s143
    %p145 = scmp.eq.s32.totalorder %s20, 0
    %p146 = por %p144, %p145
    %s148 = sadd.s32 %s147, 1
    %p151 = scmp.eq.s32.totalorder %s14, 1
    %p152 = scmp.ne.s32.totalorder %s147, %s149
    %p153 = scmp.eq.s32.totalorder %s14, 0
    %p154 = por %p152, %p153
    %p155 = scmp.ne.s32.totalorder %s147, %s149
    %p156 = scmp.eq.s32.totalorder %s19, 1
    %p157 = por %p155, %p156
    %p158 = scmp.ne.s32.totalorder %s149, %s150
    %p159 = scmp.eq.s32.totalorder %s19, 0
    %p160 = por %p158, %p159
    %p161 = scmp.ne.s32.totalorder %s149, %s150
    %p162 = scmp.eq.s32.totalorder %s20, 1
    %p163 = por %p161, %p162
    %p165 = scmp.ne.s32.totalorder %s150, %s164
    %p166 = scmp.eq.s32.totalorder %s20, 0
    %p167 = por %p165, %p166
    %s169 = sadd.s32 %s168, 1
    %p172 = scmp.eq.s32.totalorder %s14, 1
    %p173 = scmp.ne.s32.totalorder %s168, %s170
    %p174 = scmp.eq.s32.totalorder %s14, 0
    %p175 = por %p173, %p174
    %p176 = scmp.ne.s32.totalorder %s168, %s170
    %p177 = scmp.eq.s32.totalorder %s19, 1
    %p178 = por %p176, %p177
    %p179 = scmp.ne.s32.totalorder %s170, %s171
    %p180 = scmp.eq.s32.totalorder %s19, 0
    %p181 = por %p179, %p180
    %p182 = scmp.ne.s32.totalorder %s170, %s171
    %p183 = scmp.eq.s32.totalorder %s20, 1
    %p184 = por %p182, %p183
    %p186 = scmp.ne.s32.totalorder %s171, %s185
    %p187 = scmp.eq.s32.totalorder %s20, 0
    %p188 = por %p186, %p187
    %s190 = sadd.s32 %s189, 1
    %p193 = scmp.eq.s32.totalorder %s14, 1
    %p194 = scmp.ne.s32.totalorder %s189, %s191
    %p195 = scmp.eq.s32.totalorder %s14, 0
    %p196 = por %p194, %p195
    %p197 = scmp.ne.s32.totalorder %s189, %s191
    %p198 = scmp.eq.s32.totalorder %s19, 1
    %p199 = por %p197, %p198
    %p200 = scmp.ne.s32.totalorder %s191, %s192
    %p201 = scmp.eq.s32.totalorder %s19, 0
    %p202 = por %p200, %p201
    %p203 = scmp.ne.s32.totalorder %s191, %s192
    %p204 = scmp.eq.s32.totalorder %s20, 1
    %p205 = por %p203, %p204
    %p207 = scmp.ne.s32.totalorder %s192, %s206
    %p208 = scmp.eq.s32.totalorder %s20, 0
    %p209 = por %p207, %p208
    %s210 = ssub.s32 %s14, %s21
    %p211 = scmp.eq.s32.totalorder %s210, 0
    %s213 = sadd.s32 %s212, 1
    %s214 = scalar_select %p211, %s212, %s213
    %p217 = pneg %p211
    %p218 = scmp.eq.s32.totalorder %s14, 1
    %p219 = por %p217, %p218
    %p220 = scmp.ne.s32.totalorder %s212, %s215
    %p221 = scmp.eq.s32.totalorder %s14, 0
    %p222 = por %p220, %p221
    %p223 = scmp.ne.s32.totalorder %s212, %s215
    %p224 = scmp.eq.s32.totalorder %s19, 1
    %p225 = por %p223, %p224
    %p226 = scmp.ne.s32.totalorder %s215, %s216
    %p227 = scmp.eq.s32.totalorder %s19, 0
    %p228 = por %p226, %p227
    %p229 = scmp.ne.s32.totalorder %s215, %s216
    %p230 = scmp.eq.s32.totalorder %s20, 1
    %p231 = por %p229, %p230
    %p233 = scmp.ne.s32.totalorder %s216, %s232
    %p234 = scmp.eq.s32.totalorder %s20, 0
    %p235 = por %p233, %p234
    %p236 = scmp.le.s32.totalorder 1, %s14
    %p237 = scmp.lt.s32.totalorder %s14, 3
    %p238 = pnand %p236, %p237
    %p239 = pneg %p238
    // Predicated region
    $region9: #{casseq_forward.1} parent=5 // pred_check
      _
    $region10: #{casseq_forward.1} parent=5 // pred_check_branch
      %241 = sbr.rel (%p238) target = $region12
    $region11: #{casseq_forward.1} parent=5 // pred_region
      %s242 = ssub.s32 %s14, 1
      // Predicated region
      $region13: #{casseq_forward.1} parent=11 // pred_check
        %p243 = pneg %p139
      $region14: #{casseq_forward.1} parent=11 // pred_check_branch
        %245 = sbr.rel (%p243) target = $region16
      $region15: #{casseq_forward.1} parent=11 // pred_region
        _
      $region16: #{casseq_forward.1} parent=11 // pred_fallthru
        _
      // Predicated region
      $region17: #{casseq_forward.1} parent=11 // pred_check
        %p246 = pneg %p160
      $region18: #{casseq_forward.1} parent=11 // pred_check_branch
        %248 = sbr.rel (%p246) target = $region20
      $region19: #{casseq_forward.1} parent=11 // pred_region
        _
      $region20: #{casseq_forward.1} parent=11 // pred_fallthru
        _
      // Predicated region
      $region21: #{casseq_forward.1} parent=11 // pred_check
        %p249 = pneg %p181
      $region22: #{casseq_forward.1} parent=11 // pred_check_branch
        %251 = sbr.rel (%p249) target = $region24
      $region23: #{casseq_forward.1} parent=11 // pred_region
        _
      $region24: #{casseq_forward.1} parent=11 // pred_fallthru
        _
      // Predicated region
      $region25: #{casseq_forward.1} parent=11 // pred_check
        %p252 = pneg %p202
      $region26: #{casseq_forward.1} parent=11 // pred_check_branch
        %254 = sbr.rel (%p252) target = $region28
      $region27: #{casseq_forward.1} parent=11 // pred_region
        _
      $region28: #{casseq_forward.1} parent=11 // pred_fallthru
        _
    $region12: #{casseq_forward.1} parent=5 // pred_fallthru
      _
    %p255 = scmp.lt.s32.totalorder %s14, 2
    // Predicated region
    $region29: #{casseq_forward.1} parent=5 // pred_check
      %p256 = pneg %p255
    $region30: #{casseq_forward.1} parent=5 // pred_check_branch
      %258 = sbr.rel (%p256) target = $region32
    $region31: #{casseq_forward.1} parent=5 // pred_region
      // Predicated region
      $region33: #{casseq_forward.1} parent=31 // pred_check
        %p259 = pneg %p34
      $region34: #{casseq_forward.1} parent=31 // pred_check_branch
        %261 = sbr.rel (%p259) target = $region36
      $region35: #{casseq_forward.1} parent=31 // pred_region
        %p262 = scmp.lt.s32.totalorder %s14, 1
        %s263 = scalar_select %p262, %s14, 1
        %s264 = smul.addr %s263, 8
        %s265 = scalar_lea.vmem %s0, %s264
      $region36: #{casseq_forward.1} parent=31 // pred_fallthru
        _
      // Predicated region
      $region37: #{casseq_forward.1} parent=31 // pred_check
        %p266 = pneg %p60
      $region38: #{casseq_forward.1} parent=31 // pred_check_branch
        %268 = sbr.rel (%p266) target = $region40
      $region39: #{casseq_forward.1} parent=31 // pred_region
        %p269 = scmp.lt.s32.totalorder %s14, 1
        %s270 = scalar_select %p269, %s14, 1
        %s271 = smul.addr %s270, 8
        %s272 = scalar_lea.vmem %s1, %s271
      $region40: #{casseq_forward.1} parent=31 // pred_fallthru
        _
      // Predicated region
      $region41: #{casseq_forward.1} parent=31 // pred_check
        %p273 = pneg %p86
      $region42: #{casseq_forward.1} parent=31 // pred_check_branch
        %275 = sbr.rel (%p273) target = $region44
      $region43: #{casseq_forward.1} parent=31 // pred_region
        %p276 = scmp.lt.s32.totalorder %s14, 1
        %s277 = scalar_select %p276, %s14, 1
        %s278 = smul.addr %s277, 8
        %s279 = scalar_lea.vmem %s2, %s278
      $region44: #{casseq_forward.1} parent=31 // pred_fallthru
        _
      // Predicated region
      $region45: #{casseq_forward.1} parent=31 // pred_check
        %p280 = pneg %p112
      $region46: #{casseq_forward.1} parent=31 // pred_check_branch
        %282 = sbr.rel (%p280) target = $region48
      $region47: #{casseq_forward.1} parent=31 // pred_region
        %p283 = scmp.lt.s32.totalorder %s14, 1
        %s284 = scalar_select %p283, %s14, 1
        %s285 = smul.addr %s284, 8
        %s286 = scalar_lea.vmem %s3, %s285
      $region48: #{casseq_forward.1} parent=31 // pred_fallthru
        _
    $region32: #{casseq_forward.1} parent=5 // pred_fallthru
      _
    %p287 = scmp.le.s32.totalorder 1, %s14
    %p288 = scmp.lt.s32.totalorder %s14, 3
    %p289 = pnand %p287, %p288
    %p290 = pneg %p289
    // Predicated region
    $region49: #{casseq_forward.1} parent=5 // pred_check
      _
    $region50: #{casseq_forward.1} parent=5 // pred_check_branch
      %292 = sbr.rel (%p289) target = $region52
    $region51: #{casseq_forward.1} parent=5 // pred_region
      %s293 = ssub.s32 %s14, 1
      %p294 = scmp.lt.s32.totalorder %s19, 1
      %s295 = scalar_select %p294, %s19, 1
      %s296 = smul.addr %s295, 8
      %s297 = scalar_lea.vmem %s0, %s296
      %p298 = pneg %p40
      %p299 = pneg %p37
      %p300 = scmp.lt.s32.totalorder %s19, 1
      %s301 = scalar_select %p300, %s19, 1
      %s302 = smul.addr %s301, 8
      %s303 = scalar_lea.vmem %s1, %s302
      %p304 = pneg %p66
      %p305 = pneg %p63
      %p306 = scmp.lt.s32.totalorder %s19, 1
      %s307 = scalar_select %p306, %s19, 1
      %s308 = smul.addr %s307, 8
      %s309 = scalar_lea.vmem %s2, %s308
      %p310 = pneg %p92
      %p311 = pneg %p89
      %p312 = scmp.lt.s32.totalorder %s19, 1
      %s313 = scalar_select %p312, %s19, 1
      %s314 = smul.addr %s313, 8
      %s315 = scalar_lea.vmem %s3, %s314
      %p316 = pneg %p118
      %p317 = pneg %p115
      %p318 = pneg %p139
      %p319 = pneg %p136
      %p320 = pneg %p160
      %p321 = pneg %p157
      %p322 = pneg %p181
      %p323 = pneg %p178
      %p324 = pneg %p202
      %p325 = pneg %p199
      %p326 = pneg %p228
      %p327 = pneg %p225
      %p328 = scmp.lt.s32.totalorder %s19, 1
      %s329 = scalar_select %p328, %s19, 1
      %s330 = smul.addr %s329, 8
      %s331 = scalar_lea.vmem %s8, %s330
      %p332 = scmp.lt.s32.totalorder %s19, 1
      %s333 = scalar_select %p332, %s19, 1
      %s334 = smul.addr %s333, 8
      %s335 = scalar_lea.vmem %s0, %s334
      %p336 = scmp.lt.s32.totalorder %s19, 1
      %s337 = scalar_select %p336, %s19, 1
      %s338 = smul.addr %s337, 8
      %s339 = scalar_lea.vmem %s1, %s338
      %p340 = scmp.lt.s32.totalorder %s19, 1
      %s341 = scalar_select %p340, %s19, 1
      %s342 = smul.addr %s341, 8
      %s343 = scalar_lea.vmem %s2, %s342
      %p344 = scmp.lt.s32.totalorder %s19, 1
      %s345 = scalar_select %p344, %s19, 1
      %s346 = smul.addr %s345, 8
      %s347 = scalar_lea.vmem %s3, %s346
      %p348 = scmp.lt.s32.totalorder %s19, 1
      %s349 = scalar_select %p348, %s19, 1
      %s350 = smul.addr %s349, 8
      %s351 = scalar_lea.vmem %s8, %s350
      %v352 = vld [vmem:[%s335] sm:$0xff]
      %v353 = vld [vmem:[%s339] sm:$0xff]
      %355 = vset.pattern.permute.xlu0 0
      %356 = vperm.xlu0 %355, %v353
      %v357 = vpop.permute.xlu0 %356
      %v359 = vlaneseq
      %v360 = vshrl.u32 %v359, 7
      %v361 = vlaneseq
      %v362 = vand.u32 %v361, 127
      %vm363 = vcmp.le.s32.totalorder %v362, %v360
      %v364 = vsel %vm363, 0.0, -1e+30
      %v365 = vld [vmem:[%s4] sm:$0xff]
      %v366 = vld [vmem:[%s4 + $0x8] sm:$0xff]
      %v367 = vld [vmem:[%s4 + $0x10] sm:$0xff]
      %v368 = vld [vmem:[%s4 + $0x18] sm:$0xff]
      %v369 = vld [vmem:[%s4 + $0x20] sm:$0xff]
      %v370 = vld [vmem:[%s4 + $0x28] sm:$0xff]
      %v371 = vld [vmem:[%s4 + $0x30] sm:$0xff]
      %v372 = vld [vmem:[%s4 + $0x38] sm:$0xff]
      %vm373 = vcmask 261120
      %v375 = vsel %vm373, %v352, 0
      %377 = vmatprep.subr.mxu0 %v366
      %378 = vmatpush1.msra.mxu0 %v365
      %379 = vmatprep.subr.mxu0 %v368
      %380 = vmatpush1.msra.mxu0 %v367
      %381 = vmatprep.subr.mxu0 %v370
      %382 = vmatpush1.msra.mxu0 %v369
      %383 = vmatprep.subr.mxu0 %v372
      %384 = vmatpush1.msra.mxu0 %v371
      %385 = vmatprep.subr.mxu0 0.0
      %386 = vmatpush1.msra.mxu0 0.0
      %387 = vmatprep.subr.mxu0 0.0
      %388 = vmatpush1.msra.mxu0 0.0
      %389 = vmatprep.subr.mxu0 0.0
      %390 = vmatpush1.msra.mxu0 0.0
      %391 = vmatprep.subr.mxu0 0.0
      %392 = vmatpush1.msra.mxu0 0.0
      %393 = vmatprep.subr.mxu0 0.0
      %394 = vmatpush1.msra.mxu0 0.0
      %395 = vmatprep.subr.mxu0 0.0
      %396 = vmatpush1.msra.mxu0 0.0
      %397 = vmatprep.subr.mxu0 0.0
      %398 = vmatpush1.msra.mxu0 0.0
      %399 = vmatprep.subr.mxu0 0.0
      %400 = vmatpush1.msra.mxu0 0.0
      %401 = vmatprep.subr.mxu0 0.0
      %402 = vmatpush1.msra.mxu0 0.0
      %403 = vmatprep.subr.mxu0 0.0
      %404 = vmatpush1.msra.mxu0 0.0
      %405 = vmatprep.subr.mxu0 0.0
      %406 = vmatpush1.msra.mxu0 0.0
      %407 = vmatprep.subr.mxu0 0.0
      %408 = vmatpush1.msra.mxu0 0.0
      %409 = vmatprep.subr.mxu0 0.0
      %410 = vmatpush1.msra.mxu0 0.0
      %411 = vmatprep.subr.mxu0 0.0
      %412 = vmatpush1.msra.mxu0 0.0
      %413 = vmatprep.subr.mxu0 0.0
      %414 = vmatpush1.msra.mxu0 0.0
      %415 = vmatprep.subr.mxu0 0.0
      %416 = vmatpush1.msra.mxu0 0.0
      %417 = vmatprep.subr.mxu0 0.0
      %418 = vmatpush1.msra.mxu0 0.0
      %419 = vmatprep.subr.mxu0 0.0
      %420 = vmatpush1.msra.mxu0 0.0
      %421 = vmatprep.subr.mxu0 0.0
      %422 = vmatpush1.msra.mxu0 0.0
      %423 = vmatprep.subr.mxu0 0.0
      %424 = vmatpush1.msra.mxu0 0.0
      %425 = vmatprep.subr.mxu0 0.0
      %426 = vmatpush1.msra.mxu0 0.0
      %427 = vmatprep.subr.mxu0 0.0
      %428 = vmatpush1.msra.mxu0 0.0
      %429 = vmatprep.subr.mxu0 0.0
      %430 = vmatpush1.msra.mxu0 0.0
      %431 = vmatprep.subr.mxu0 0.0
      %432 = vmatpush1.msra.mxu0 0.0
      %433 = vmatprep.subr.mxu0 0.0
      %434 = vmatpush1.msra.mxu0 0.0
      %435 = vmatprep.subr.mxu0 0.0
      %436 = vmatpush1.msra.mxu0 0.0
      %437 = vmatprep.subr.mxu0 0.0
      %438 = vmatpush1.msra.mxu0 0.0
      %439 = vmatprep.subr.mxu0 0.0
      %440 = vmatpush1.msra.mxu0 0.0
      %441 = vmatprep.mubr.f32.mxu0 0.0
      %442 = vmatmul.mubr.f32.gmra.mrb[0].mxu0 %v375
      %v443 = vpop.f32.mrb[0].mxu0
      %v444 = vadd.f32 0.0, %v443
      %v445 = vpop.f32.mrb[0].mxu0
      %v446 = vadd.f32 0.0, %v445
      %447 = vdwg.mxu0
      %v448 = vld [vmem:[%s6] sm:$0x1]
      %v449 = vlaneseq
      %v450 = vshrl.u32 %v449, 7
      %v451 = vsub.s32 0, %v450
      %v452 = vrot.slane %v448, %v451
      %454 = vrot.lane.b32.xlu0 %v452, 96
      %v455 = vpop.permute.xlu0 %454
      %v457 = vadd.f32 %v444, %v455
      %vm458 = vcmask 802560
      %v459 = vsel %vm458, %v457, -inf
      %460 = vmax.xlane.f32.xlu0 %v459
      %v461 = vpop.xlane.xlu0 %460
      %v462 = vsub.f32 %v457, %v461
      %v463 = vmul.f32 %v462, 1.442695
      %v464 = vpow.pop %v463
      %466 = vrot.lane.b32.xlu0 %v464, 32
      %v467 = vpop.permute.xlu0 %466
      %vm469 = vcmask 15360
      %v470 = vsel %vm469, %v467, 0.0
      %471 = vadd.xlane.f32.xlu0 %v470
      %v472 = vpop.xlane.xlu0 %471
      %v473 = vrcp.pop %v472
      %v474 = vmul.f32 %v464, %v473
      %476 = vrot.lane.b32.xlu0 %v444, 96
      %v477 = vpop.permute.xlu0 %476
      %v478 = vsel %vm373, %v444, 0
      %v480 = vsel %vm373, %v477, 0
      %482 = vmatprep.subr.mxu0 0.0
      %483 = vmatpush1.xpose.msra.mxu0 %v480
      %484 = vmatprep.subr.mxu0 0.0
      %485 = vmatpush1.xpose.msra.mxu0 0.0
      %486 = vmatprep.subr.mxu0 0.0
      %487 = vmatpush1.xpose.msra.mxu0 0.0
      %488 = vmatprep.subr.mxu0 0.0
      %489 = vmatpush1.xpose.msra.mxu0 0.0
      %490 = vmatprep.subr.mxu0 0.0
      %491 = vmatpush1.xpose.msra.mxu0 0.0
      %492 = vmatprep.subr.mxu0 0.0
      %493 = vmatpush1.xpose.msra.mxu0 0.0
      %494 = vmatprep.subr.mxu0 0.0
      %495 = vmatpush1.xpose.msra.mxu0 0.0
      %496 = vmatprep.subr.mxu0 0.0
      %497 = vmatpush1.xpose.msra.mxu0 0.0
      %498 = vmatprep.subr.mxu0 0.0
      %499 = vmatpush1.xpose.msra.mxu0 0.0
      %500 = vmatprep.subr.mxu0 0.0
      %501 = vmatpush1.xpose.msra.mxu0 0.0
      %502 = vmatprep.subr.mxu0 0.0
      %503 = vmatpush1.xpose.msra.mxu0 0.0
      %504 = vmatprep.subr.mxu0 0.0
      %505 = vmatpush1.xpose.msra.mxu0 0.0
      %506 = vmatprep.subr.mxu0 0.0
      %507 = vmatpush1.xpose.msra.mxu0 0.0
      %508 = vmatprep.subr.mxu0 0.0
      %509 = vmatpush1.xpose.msra.mxu0 0.0
      %510 = vmatprep.subr.mxu0 0.0
      %511 = vmatpush1.xpose.msra.mxu0 0.0
      %512 = vmatprep.subr.mxu0 0.0
      %513 = vmatpush1.xpose.msra.mxu0 0.0
      %514 = vmatprep.subr.mxu0 0.0
      %515 = vmatpush1.xpose.msra.mxu0 0.0
      %516 = vmatprep.subr.mxu0 0.0
      %517 = vmatpush1.xpose.msra.mxu0 0.0
      %518 = vmatprep.subr.mxu0 0.0
      %519 = vmatpush1.xpose.msra.mxu0 0.0
      %520 = vmatprep.subr.mxu0 0.0
      %521 = vmatpush1.xpose.msra.mxu0 0.0
      %522 = vmatprep.subr.mxu0 0.0
      %523 = vmatpush1.xpose.msra.mxu0 0.0
      %524 = vmatprep.subr.mxu0 0.0
      %525 = vmatpush1.xpose.msra.mxu0 0.0
      %526 = vmatprep.subr.mxu0 0.0
      %527 = vmatpush1.xpose.msra.mxu0 0.0
      %528 = vmatprep.subr.mxu0 0.0
      %529 = vmatpush1.xpose.msra.mxu0 0.0
      %530 = vmatprep.subr.mxu0 0.0
      %531 = vmatpush1.xpose.msra.mxu0 0.0
      %532 = vmatprep.subr.mxu0 0.0
      %533 = vmatpush1.xpose.msra.mxu0 0.0
      %534 = vmatprep.subr.mxu0 0.0
      %535 = vmatpush1.xpose.msra.mxu0 0.0
      %536 = vmatprep.subr.mxu0 0.0
      %537 = vmatpush1.xpose.msra.mxu0 0.0
      %538 = vmatprep.subr.mxu0 0.0
      %539 = vmatpush1.xpose.msra.mxu0 0.0
      %540 = vmatprep.subr.mxu0 0.0
      %541 = vmatpush1.xpose.msra.mxu0 0.0
      %542 = vmatprep.subr.mxu0 0.0
      %543 = vmatpush1.xpose.msra.mxu0 0.0
      %544 = vmatprep.subr.mxu0 0.0
      %545 = vmatpush1.xpose.msra.mxu0 0.0
      %546 = vmatprep.mubr.f32.mxu0 0.0
      %547 = vmatmul.mubr.f32.gmra.mrb[0].mxu0 %v478
      %v548 = vpop.f32.mrb[0].mxu0
      %v549 = vadd.f32 %v364, %v548
      %v550 = vpop.f32.mrb[0].mxu0
      %551 = vdwg.mxu0
      %vm552 = vcmask 64512
      %v553 = vsel %vm552, %v549, -inf
      %554 = vmax.xlane.f32.xlu0 %v553
      %v555 = vpop.xlane.xlu0 %554
      %v556 = vsub.f32 %v549, %v555
      %v557 = vmul.f32 %v556, 1.442695
      %v558 = vpow.pop %v557
      %v559 = vsel %vm552, %v558, 0.0
      %560 = vadd.xlane.f32.xlu0 %v559
      %v561 = vpop.xlane.xlu0 %560
      %v562 = vrcp.pop %v561
      %v563 = vmul.f32 %v558, %v562
      %564 = vrot.lane.b32.xlu0 %v444, 64
      %v565 = vpop.permute.xlu0 %564
      %v568 = vsel %vm552, %v563, 0
      %570 = vmatprep.subr.mxu0 0.0
      %571 = vmatpush1.msra.mxu0 %v565
      %572 = vmatprep.subr.mxu0 0.0
      %573 = vmatpush1.msra.mxu0 0.0
      %574 = vmatprep.subr.mxu0 0.0
      %575 = vmatpush1.msra.mxu0 0.0
      %576 = vmatprep.subr.mxu0 0.0
      %577 = vmatpush1.msra.mxu0 0.0
      %578 = vmatprep.subr.mxu0 0.0
      %579 = vmatpush1.msra.mxu0 0.0
      %580 = vmatprep.subr.mxu0 0.0
      %581 = vmatpush1.msra.mxu0 0.0
      %582 = vmatprep.subr.mxu0 0.0
      %583 = vmatpush1.msra.mxu0 0.0
      %584 = vmatprep.subr.mxu0 0.0
      %585 = vmatpush1.msra.mxu0 0.0
      %586 = vmatprep.subr.mxu0 0.0
      %587 = vmatpush1.msra.mxu0 0.0
      %588 = vmatprep.subr.mxu0 0.0
      %589 = vmatpush1.msra.mxu0 0.0
      %590 = vmatprep.subr.mxu0 0.0
      %591 = vmatpush1.msra.mxu0 0.0
      %592 = vmatprep.subr.mxu0 0.0
      %593 = vmatpush1.msra.mxu0 0.0
      %594 = vmatprep.subr.mxu0 0.0
      %595 = vmatpush1.msra.mxu0 0.0
      %596 = vmatprep.subr.mxu0 0.0
      %597 = vmatpush1.msra.mxu0 0.0
      %598 = vmatprep.subr.mxu0 0.0
      %599 = vmatpush1.msra.mxu0 0.0
      %600 = vmatprep.subr.mxu0 0.0
      %601 = vmatpush1.msra.mxu0 0.0
      %602 = vmatprep.subr.mxu0 0.0
      %603 = vmatpush1.msra.mxu0 0.0
      %604 = vmatprep.subr.mxu0 0.0
      %605 = vmatpush1.msra.mxu0 0.0
      %606 = vmatprep.subr.mxu0 0.0
      %607 = vmatpush1.msra.mxu0 0.0
      %608 = vmatprep.subr.mxu0 0.0
      %609 = vmatpush1.msra.mxu0 0.0
      %610 = vmatprep.subr.mxu0 0.0
      %611 = vmatpush1.msra.mxu0 0.0
      %612 = vmatprep.subr.mxu0 0.0
      %613 = vmatpush1.msra.mxu0 0.0
      %614 = vmatprep.subr.mxu0 0.0
      %615 = vmatpush1.msra.mxu0 0.0
      %616 = vmatprep.subr.mxu0 0.0
      %617 = vmatpush1.msra.mxu0 0.0
      %618 = vmatprep.subr.mxu0 0.0
      %619 = vmatpush1.msra.mxu0 0.0
      %620 = vmatprep.subr.mxu0 0.0
      %621 = vmatpush1.msra.mxu0 0.0
      %622 = vmatprep.subr.mxu0 0.0
      %623 = vmatpush1.msra.mxu0 0.0
      %624 = vmatprep.subr.mxu0 0.0
      %625 = vmatpush1.msra.mxu0 0.0
      %626 = vmatprep.subr.mxu0 0.0
      %627 = vmatpush1.msra.mxu0 0.0
      %628 = vmatprep.subr.mxu0 0.0
      %629 = vmatpush1.msra.mxu0 0.0
      %630 = vmatprep.subr.mxu0 0.0
      %631 = vmatpush1.msra.mxu0 0.0
      %632 = vmatprep.subr.mxu0 0.0
      %633 = vmatpush1.msra.mxu0 0.0
      %634 = vmatprep.mubr.f32.mxu0 0.0
      %635 = vmatmul.mubr.f32.gmra.mrb[0].mxu0 %v568
      %v636 = vpop.f32.mrb[0].mxu0
      %v637 = vadd.f32 0.0, %v636
      %v638 = vpop.f32.mrb[0].mxu0
      %639 = vdwg.mxu0
      %v640 = vadd.f32 %v352, %v637
      %v641 = vmul.f32 %v640, %v357
      %v642 = vld [vmem:[%s6 + $0x1] sm:$0x1]
      %v643 = vlaneseq
      %v644 = vshrl.u32 %v643, 7
      %v645 = vsub.s32 0, %v644
      %v646 = vrot.slane %v642, %v645
      %648 = vrot.lane.b32.xlu0 %v646, 66
      %v649 = vpop.permute.xlu0 %648
      %v651 = vadd.f32 %v446, %v649
      %vm652 = vcmask 556560
      %v653 = vsel %vm652, %v651, -inf
      %654 = vmax.xlane.f32.xlu0 %v653
      %v655 = vpop.xlane.xlu0 %654
      %v656 = vsub.f32 %v651, %v655
      %v657 = vmul.f32 %v656, 1.442695
      %v658 = vpow.pop %v657
      %660 = vrot.lane.b32.xlu0 %v658, 62
      %v661 = vpop.permute.xlu0 %660
      %v663 = vsel %vm469, %v661, 0.0
      %664 = vadd.xlane.f32.xlu0 %v663
      %v665 = vpop.xlane.xlu0 %664
      %v666 = vrcp.pop %v665
      %v667 = vmul.f32 %v658, %v666
      %669 = vrot.lane.b32.xlu0 %v444, 30
      %v670 = vpop.permute.xlu0 %669
      %671 = vrot.lane.b32.xlu0 %v446, 30
      %v672 = vpop.permute.xlu0 %671
      %vm673 = vcmask 244736
      %v674 = vsel %vm673, %v670, %v672
      %675 = vrot.lane.b32.xlu0 %v446, 126
      %v676 = vpop.permute.xlu0 %675
      %v677 = vsel %vm373, %v674, 0
      %v679 = vsel %vm373, %v676, 0
      %681 = vmatprep.subr.mxu0 0.0
      %682 = vmatpush1.xpose.msra.mxu0 %v679
      %683 = vmatprep.subr.mxu0 0.0
      %684 = vmatpush1.xpose.msra.mxu0 0.0
      %685 = vmatprep.subr.mxu0 0.0
      %686 = vmatpush1.xpose.msra.mxu0 0.0
      %687 = vmatprep.subr.mxu0 0.0
      %688 = vmatpush1.xpose.msra.mxu0 0.0
      %689 = vmatprep.subr.mxu0 0.0
      %690 = vmatpush1.xpose.msra.mxu0 0.0
      %691 = vmatprep.subr.mxu0 0.0
      %692 = vmatpush1.xpose.msra.mxu0 0.0
      %693 = vmatprep.subr.mxu0 0.0
      %694 = vmatpush1.xpose.msra.mxu0 0.0
      %695 = vmatprep.subr.mxu0 0.0
      %696 = vmatpush1.xpose.msra.mxu0 0.0
      %697 = vmatprep.subr.mxu0 0.0
      %698 = vmatpush1.xpose.msra.mxu0 0.0
      %699 = vmatprep.subr.mxu0 0.0
      %700 = vmatpush1.xpose.msra.mxu0 0.0
      %701 = vmatprep.subr.mxu0 0.0
      %702 = vmatpush1.xpose.msra.mxu0 0.0
      %703 = vmatprep.subr.mxu0 0.0
      %704 = vmatpush1.xpose.msra.mxu0 0.0
      %705 = vmatprep.subr.mxu0 0.0
      %706 = vmatpush1.xpose.msra.mxu0 0.0
      %707 = vmatprep.subr.mxu0 0.0
      %708 = vmatpush1.xpose.msra.mxu0 0.0
      %709 = vmatprep.subr.mxu0 0.0
      %710 = vmatpush1.xpose.msra.mxu0 0.0
      %711 = vmatprep.subr.mxu0 0.0
      %712 = vmatpush1.xpose.msra.mxu0 0.0
      %713 = vmatprep.subr.mxu0 0.0
      %714 = vmatpush1.xpose.msra.mxu0 0.0
      %715 = vmatprep.subr.mxu0 0.0
      %716 = vmatpush1.xpose.msra.mxu0 0.0
      %717 = vmatprep.subr.mxu0 0.0
      %718 = vmatpush1.xpose.msra.mxu0 0.0
      %719 = vmatprep.subr.mxu0 0.0
      %720 = vmatpush1.xpose.msra.mxu0 0.0
      %721 = vmatprep.subr.mxu0 0.0
      %722 = vmatpush1.xpose.msra.mxu0 0.0
      %723 = vmatprep.subr.mxu0 0.0
      %724 = vmatpush1.xpose.msra.mxu0 0.0
      %725 = vmatprep.subr.mxu0 0.0
      %726 = vmatpush1.xpose.msra.mxu0 0.0
      %727 = vmatprep.subr.mxu0 0.0
      %728 = vmatpush1.xpose.msra.mxu0 0.0
      %729 = vmatprep.subr.mxu0 0.0
      %730 = vmatpush1.xpose.msra.mxu0 0.0
      %731 = vmatprep.subr.mxu0 0.0
      %732 = vmatpush1.xpose.msra.mxu0 0.0
      %733 = vmatprep.subr.mxu0 0.0
      %734 = vmatpush1.xpose.msra.mxu0 0.0
      %735 = vmatprep.subr.mxu0 0.0
      %736 = vmatpush1.xpose.msra.mxu0 0.0
      %737 = vmatprep.subr.mxu0 0.0
      %738 = vmatpush1.xpose.msra.mxu0 0.0
      %739 = vmatprep.subr.mxu0 0.0
      %740 = vmatpush1.xpose.msra.mxu0 0.0
      %741 = vmatprep.subr.mxu0 0.0
      %742 = vmatpush1.xpose.msra.mxu0 0.0
      %743 = vmatprep.subr.mxu0 0.0
      %744 = vmatpush1.xpose.msra.mxu0 0.0
      %745 = vmatprep.mubr.f32.mxu0 0.0
      %746 = vmatmul.mubr.f32.gmra.mrb[0].mxu0 %v677
      %v747 = vpop.f32.mrb[0].mxu0
      %v748 = vadd.f32 %v364, %v747
      %v749 = vpop.f32.mrb[0].mxu0
      %750 = vdwg.mxu0
      %v751 = vsel %vm552, %v748, -inf
      %752 = vmax.xlane.f32.xlu0 %v751
      %v753 = vpop.xlane.xlu0 %752
      %v754 = vsub.f32 %v748, %v753
      %v755 = vmul.f32 %v754, 1.442695
      %v756 = vpow.pop %v755
      %v757 = vsel %vm552, %v756, 0.0
      %758 = vadd.xlane.f32.xlu0 %v757
      %v759 = vpop.xlane.xlu0 %758
      %v760 = vrcp.pop %v759
      %v761 = vmul.f32 %v756, %v760
      %762 = vrot.lane.b32.xlu0 %v446, 94
      %v763 = vpop.permute.xlu0 %762
      %v766 = vsel %vm552, %v761, 0
      %768 = vmatprep.subr.mxu0 0.0
      %769 = vmatpush1.msra.mxu0 %v763
      %770 = vmatprep.subr.mxu0 0.0
      %771 = vmatpush1.msra.mxu0 0.0
      %772 = vmatprep.subr.mxu0 0.0
      %773 = vmatpush1.msra.mxu0 0.0
      %774 = vmatprep.subr.mxu0 0.0
      %775 = vmatpush1.msra.mxu0 0.0
      %776 = vmatprep.subr.mxu0 0.0
      %777 = vmatpush1.msra.mxu0 0.0
      %778 = vmatprep.subr.mxu0 0.0
      %779 = vmatpush1.msra.mxu0 0.0
      %780 = vmatprep.subr.mxu0 0.0
      %781 = vmatpush1.msra.mxu0 0.0
      %782 = vmatprep.subr.mxu0 0.0
      %783 = vmatpush1.msra.mxu0 0.0
      %784 = vmatprep.subr.mxu0 0.0
      %785 = vmatpush1.msra.mxu0 0.0
      %786 = vmatprep.subr.mxu0 0.0
      %787 = vmatpush1.msra.mxu0 0.0
      %788 = vmatprep.subr.mxu0 0.0
      %789 = vmatpush1.msra.mxu0 0.0
      %790 = vmatprep.subr.mxu0 0.0
      %791 = vmatpush1.msra.mxu0 0.0
      %792 = vmatprep.subr.mxu0 0.0
      %793 = vmatpush1.msra.mxu0 0.0
      %794 = vmatprep.subr.mxu0 0.0
      %795 = vmatpush1.msra.mxu0 0.0
      %796 = vmatprep.subr.mxu0 0.0
      %797 = vmatpush1.msra.mxu0 0.0
      %798 = vmatprep.subr.mxu0 0.0
      %799 = vmatpush1.msra.mxu0 0.0
      %800 = vmatprep.subr.mxu0 0.0
      %801 = vmatpush1.msra.mxu0 0.0
      %802 = vmatprep.subr.mxu0 0.0
      %803 = vmatpush1.msra.mxu0 0.0
      %804 = vmatprep.subr.mxu0 0.0
      %805 = vmatpush1.msra.mxu0 0.0
      %806 = vmatprep.subr.mxu0 0.0
      %807 = vmatpush1.msra.mxu0 0.0
      %808 = vmatprep.subr.mxu0 0.0
      %809 = vmatpush1.msra.mxu0 0.0
      %810 = vmatprep.subr.mxu0 0.0
      %811 = vmatpush1.msra.mxu0 0.0
      %812 = vmatprep.subr.mxu0 0.0
      %813 = vmatpush1.msra.mxu0 0.0
      %814 = vmatprep.subr.mxu0 0.0
      %815 = vmatpush1.msra.mxu0 0.0
      %816 = vmatprep.subr.mxu0 0.0
      %817 = vmatpush1.msra.mxu0 0.0
      %818 = vmatprep.subr.mxu0 0.0
      %819 = vmatpush1.msra.mxu0 0.0
      %820 = vmatprep.subr.mxu0 0.0
      %821 = vmatpush1.msra.mxu0 0.0
      %822 = vmatprep.subr.mxu0 0.0
      %823 = vmatpush1.msra.mxu0 0.0
      %824 = vmatprep.subr.mxu0 0.0
      %825 = vmatpush1.msra.mxu0 0.0
      %826 = vmatprep.subr.mxu0 0.0
      %827 = vmatpush1.msra.mxu0 0.0
      %828 = vmatprep.subr.mxu0 0.0
      %829 = vmatpush1.msra.mxu0 0.0
      %830 = vmatprep.subr.mxu0 0.0
      %831 = vmatpush1.msra.mxu0 0.0
      %832 = vmatprep.mubr.f32.mxu0 0.0
      %833 = vmatmul.mubr.f32.gmra.mrb[0].mxu0 %v766
      %v834 = vpop.f32.mrb[0].mxu0
      %v835 = vadd.f32 0.0, %v834
      %v836 = vpop.f32.mrb[0].mxu0
      %837 = vdwg.mxu0
      %v838 = vadd.f32 %v352, %v835
      %v839 = vmul.f32 %v838, %v357
      %841 = vset.pattern.permute.xlu0 96
      %842 = vperm.xlu0 %841, %v474
      %v843 = vpop.permute.xlu0 %842
      %v845 = vmul.f32 %v843, %v641
      %846 = vset.pattern.permute.xlu0 97
      %847 = vperm.xlu0 %846, %v474
      %v848 = vpop.permute.xlu0 %847
      %v850 = vmul.f32 %v848, %v839
      %v851 = vadd.f32 %v845, %v850
      %853 = vset.pattern.permute.xlu0 66
      %854 = vperm.xlu0 %853, %v667
      %v855 = vpop.permute.xlu0 %854
      %v857 = vmul.f32 %v855, %v641
      %858 = vset.pattern.permute.xlu0 67
      %859 = vperm.xlu0 %858, %v667
      %v860 = vpop.permute.xlu0 %859
      %v862 = vmul.f32 %v860, %v839
      %v863 = vadd.f32 %v857, %v862
      %864 = vrot.lane.b32.xlu0 %v474, 32
      %v865 = vpop.permute.xlu0 %864
      %867 = vrot.lane.b32.xlu0 %v667, 64
      %v868 = vpop.permute.xlu0 %867
      %v870 = vsel %vm469, %v865, %v868
      %v871 = vld [vmem:[%s5] sm:$0xff]
      %v872 = vld [vmem:[%s5 + $0x8] sm:$0xff]
      %v873 = vld [vmem:[%s5 + $0x10] sm:$0xff]
      %v874 = vld [vmem:[%s5 + $0x18] sm:$0xff]
      %v876 = vsel %vm373, %v851, 0
      %878 = vmatprep.subr.mxu0 0.0
      %879 = vmatpush1.msra.mxu0 %v871
      %880 = vmatprep.subr.mxu0 0.0
      %881 = vmatpush1.msra.mxu0 %v872
      %882 = vmatprep.subr.mxu0 0.0
      %883 = vmatpush1.msra.mxu0 %v873
      %884 = vmatprep.subr.mxu0 0.0
      %885 = vmatpush1.msra.mxu0 %v874
      %886 = vmatprep.subr.mxu0 0.0
      %887 = vmatpush1.msra.mxu0 0.0
      %888 = vmatprep.subr.mxu0 0.0
      %889 = vmatpush1.msra.mxu0 0.0
      %890 = vmatprep.subr.mxu0 0.0
      %891 = vmatpush1.msra.mxu0 0.0
      %892 = vmatprep.subr.mxu0 0.0
      %893 = vmatpush1.msra.mxu0 0.0
      %894 = vmatprep.subr.mxu0 0.0
      %895 = vmatpush1.msra.mxu0 0.0
      %896 = vmatprep.subr.mxu0 0.0
      %897 = vmatpush1.msra.mxu0 0.0
      %898 = vmatprep.subr.mxu0 0.0
      %899 = vmatpush1.msra.mxu0 0.0
      %900 = vmatprep.subr.mxu0 0.0
      %901 = vmatpush1.msra.mxu0 0.0
      %902 = vmatprep.subr.mxu0 0.0
      %903 = vmatpush1.msra.mxu0 0.0
      %904 = vmatprep.subr.mxu0 0.0
      %905 = vmatpush1.msra.mxu0 0.0
      %906 = vmatprep.subr.mxu0 0.0
      %907 = vmatpush1.msra.mxu0 0.0
      %908 = vmatprep.subr.mxu0 0.0
      %909 = vmatpush1.msra.mxu0 0.0
      %910 = vmatprep.subr.mxu0 0.0
      %911 = vmatpush1.msra.mxu0 0.0
      %912 = vmatprep.subr.mxu0 0.0
      %913 = vmatpush1.msra.mxu0 0.0
      %914 = vmatprep.subr.mxu0 0.0
      %915 = vmatpush1.msra.mxu0 0.0
      %916 = vmatprep.subr.mxu0 0.0
      %917 = vmatpush1.msra.mxu0 0.0
      %918 = vmatprep.subr.mxu0 0.0
      %919 = vmatpush1.msra.mxu0 0.0
      %920 = vmatprep.subr.mxu0 0.0
      %921 = vmatpush1.msra.mxu0 0.0
      %922 = vmatprep.subr.mxu0 0.0
      %923 = vmatpush1.msra.mxu0 0.0
      %924 = vmatprep.subr.mxu0 0.0
      %925 = vmatpush1.msra.mxu0 0.0
      %926 = vmatprep.subr.mxu0 0.0
      %927 = vmatpush1.msra.mxu0 0.0
      %928 = vmatprep.subr.mxu0 0.0
      %929 = vmatpush1.msra.mxu0 0.0
      %930 = vmatprep.subr.mxu0 0.0
      %931 = vmatpush1.msra.mxu0 0.0
      %932 = vmatprep.subr.mxu0 0.0
      %933 = vmatpush1.msra.mxu0 0.0
      %934 = vmatprep.subr.mxu0 0.0
      %935 = vmatpush1.msra.mxu0 0.0
      %936 = vmatprep.subr.mxu0 0.0
      %937 = vmatpush1.msra.mxu0 0.0
      %938 = vmatprep.subr.mxu0 0.0
      %939 = vmatpush1.msra.mxu0 0.0
      %940 = vmatprep.subr.mxu0 0.0
      %941 = vmatpush1.msra.mxu0 0.0
      %942 = vmatprep.mubr.f32.mxu0 0.0
      %943 = vmatmul.mubr.f32.gmra.mrb[0].mxu0 %v876
      %v944 = vpop.f32.mrb[0].mxu0
      %v945 = vadd.f32 0.0, %v944
      %v946 = vpop.f32.mrb[0].mxu0
      %947 = vdwg.mxu0
      %v948 = vld [vmem:[%s6 + $0x2] sm:$0x1]
      %v949 = vlaneseq
      %v950 = vshrl.u32 %v949, 7
      %v951 = vsub.s32 0, %v950
      %v952 = vrot.slane %v948, %v951
      %954 = vrot.lane.b32.xlu0 %v952, 96
      %v955 = vpop.permute.xlu0 %954
      %v957 = vadd.f32 %v945, %v955
      %v958 = vsel %vm458, %v957, -inf
      %959 = vmax.xlane.f32.xlu0 %v958
      %v960 = vpop.xlane.xlu0 %959
      %v961 = vsub.f32 %v957, %v960
      %v962 = vmul.f32 %v961, 1.442695
      %v963 = vpow.pop %v962
      %965 = vrot.lane.b32.xlu0 %v963, 32
      %v966 = vpop.permute.xlu0 %965
      %v968 = vsel %vm469, %v966, 0.0
      %969 = vadd.xlane.f32.xlu0 %v968
      %v970 = vpop.xlane.xlu0 %969
      %v971 = vrcp.pop %v970
      %v972 = vmul.f32 %v963, %v971
      %974 = vrot.lane.b32.xlu0 %v945, 96
      %v975 = vpop.permute.xlu0 %974
      %v976 = vsel %vm373, %v945, 0
      %v978 = vsel %vm373, %v975, 0
      %980 = vmatprep.subr.mxu0 0.0
      %981 = vmatpush1.xpose.msra.mxu0 %v978
      %982 = vmatprep.subr.mxu0 0.0
      %983 = vmatpush1.xpose.msra.mxu0 0.0
      %984 = vmatprep.subr.mxu0 0.0
      %985 = vmatpush1.xpose.msra.mxu0 0.0
      %986 = vmatprep.subr.mxu0 0.0
      %987 = vmatpush1.xpose.msra.mxu0 0.0
      %988 = vmatprep.subr.mxu0 0.0
      %989 = vmatpush1.xpose.msra.mxu0 0.0
      %990 = vmatprep.subr.mxu0 0.0
      %991 = vmatpush1.xpose.msra.mxu0 0.0
      %992 = vmatprep.subr.mxu0 0.0
      %993 = vmatpush1.xpose.msra.mxu0 0.0
      %994 = vmatprep.subr.mxu0 0.0
      %995 = vmatpush1.xpose.msra.mxu0 0.0
      %996 = vmatprep.subr.mxu0 0.0
      %997 = vmatpush1.xpose.msra.mxu0 0.0
      %998 = vmatprep.subr.mxu0 0.0
      %999 = vmatpush1.xpose.msra.mxu0 0.0
      %1000 = vmatprep.subr.mxu0 0.0
      %1001 = vmatpush1.xpose.msra.mxu0 0.0
      %1002 = vmatprep.subr.mxu0 0.0
      %1003 = vmatpush1.xpose.msra.mxu0 0.0
      %1004 = vmatprep.subr.mxu0 0.0
      %1005 = vmatpush1.xpose.msra.mxu0 0.0
      %1006 = vmatprep.subr.mxu0 0.0
      %1007 = vmatpush1.xpose.msra.mxu0 0.0
      %1008 = vmatprep.subr.mxu0 0.0
      %1009 = vmatpush1.xpose.msra.mxu0 0.0
      %1010 = vmatprep.subr.mxu0 0.0
      %1011 = vmatpush1.xpose.msra.mxu0 0.0
      %1012 = vmatprep.subr.mxu0 0.0
      %1013 = vmatpush1.xpose.msra.mxu0 0.0
      %1014 = vmatprep.subr.mxu0 0.0
      %1015 = vmatpush1.xpose.msra.mxu0 0.0
      %1016 = vmatprep.subr.mxu0 0.0
      %1017 = vmatpush1.xpose.msra.mxu0 0.0
      %1018 = vmatprep.subr.mxu0 0.0
      %1019 = vmatpush1.xpose.msra.mxu0 0.0
      %1020 = vmatprep.subr.mxu0 0.0
      %1021 = vmatpush1.xpose.msra.mxu0 0.0
      %1022 = vmatprep.subr.mxu0 0.0
      %1023 = vmatpush1.xpose.msra.mxu0 0.0
      %1024 = vmatprep.subr.mxu0 0.0
      %1025 = vmatpush1.xpose.msra.mxu0 0.0
      %1026 = vmatprep.subr.mxu0 0.0
      %1027 = vmatpush1.xpose.msra.mxu0 0.0
      %1028 = vmatprep.subr.mxu0 0.0
      %1029 = vmatpush1.xpose.msra.mxu0 0.0
      %1030 = vmatprep.subr.mxu0 0.0
      %1031 = vmatpush1.xpose.msra.mxu0 0.0
      %1032 = vmatprep.subr.mxu0 0.0
      %1033 = vmatpush1.xpose.msra.mxu0 0.0
      %1034 = vmatprep.subr.mxu0 0.0
      %1035 = vmatpush1.xpose.msra.mxu0 0.0
      %1036 = vmatprep.subr.mxu0 0.0
      %1037 = vmatpush1.xpose.msra.mxu0 0.0
      %1038 = vmatprep.subr.mxu0 0.0
      %1039 = vmatpush1.xpose.msra.mxu0 0.0
      %1040 = vmatprep.subr.mxu0 0.0
      %1041 = vmatpush1.xpose.msra.mxu0 0.0
      %1042 = vmatprep.subr.mxu0 0.0
      %1043 = vmatpush1.xpose.msra.mxu0 0.0
      %1044 = vmatprep.mubr.f32.mxu0 0.0
      %1045 = vmatmul.mubr.f32.gmra.mrb[0].mxu0 %v976
      %v1046 = vpop.f32.mrb[0].mxu0
      %v1047 = vadd.f32 %v364, %v1046
      %v1048 = vpop.f32.mrb[0].mxu0
      %1049 = vdwg.mxu0
      %v1050 = vsel %vm552, %v1047, -inf
      %1051 = vmax.xlane.f32.xlu0 %v1050
      %v1052 = vpop.xlane.xlu0 %1051
      %v1053 = vsub.f32 %v1047, %v1052
      %v1054 = vmul.f32 %v1053, 1.442695
      %v1055 = vpow.pop %v1054
      %v1056 = vsel %vm552, %v1055, 0.0
      %1057 = vadd.xlane.f32.xlu0 %v1056
      %v1058 = vpop.xlane.xlu0 %1057
      %v1059 = vrcp.pop %v1058
      %v1060 = vmul.f32 %v1055, %v1059
      %1061 = vrot.lane.b32.xlu0 %v945, 64
      %v1062 = vpop.permute.xlu0 %1061
      %v1065 = vsel %vm552, %v1060, 0
      %1067 = vmatprep.subr.mxu0 0.0
      %1068 = vmatpush1.msra.mxu0 %v1062
      %1069 = vmatprep.subr.mxu0 0.0
      %1070 = vmatpush1.msra.mxu0 0.0
      %1071 = vmatprep.subr.mxu0 0.0
      %1072 = vmatpush1.msra.mxu0 0.0
      %1073 = vmatprep.subr.mxu0 0.0
      %1074 = vmatpush1.msra.mxu0 0.0
      %1075 = vmatprep.subr.mxu0 0.0
      %1076 = vmatpush1.msra.mxu0 0.0
      %1077 = vmatprep.subr.mxu0 0.0
      %1078 = vmatpush1.msra.mxu0 0.0
      %1079 = vmatprep.subr.mxu0 0.0
      %1080 = vmatpush1.msra.mxu0 0.0
      %1081 = vmatprep.subr.mxu0 0.0
      %1082 = vmatpush1.msra.mxu0 0.0
      %1083 = vmatprep.subr.mxu0 0.0
      %1084 = vmatpush1.msra.mxu0 0.0
      %1085 = vmatprep.subr.mxu0 0.0
      %1086 = vmatpush1.msra.mxu0 0.0
      %1087 = vmatprep.subr.mxu0 0.0
      %1088 = vmatpush1.msra.mxu0 0.0
      %1089 = vmatprep.subr.mxu0 0.0
      %1090 = vmatpush1.msra.mxu0 0.0
      %1091 = vmatprep.subr.mxu0 0.0
      %1092 = vmatpush1.msra.mxu0 0.0
      %1093 = vmatprep.subr.mxu0 0.0
      %1094 = vmatpush1.msra.mxu0 0.0
      %1095 = vmatprep.subr.mxu0 0.0
      %1096 = vmatpush1.msra.mxu0 0.0
      %1097 = vmatprep.subr.mxu0 0.0
      %1098 = vmatpush1.msra.mxu0 0.0
      %1099 = vmatprep.subr.mxu0 0.0
      %1100 = vmatpush1.msra.mxu0 0.0
      %1101 = vmatprep.subr.mxu0 0.0
      %1102 = vmatpush1.msra.mxu0 0.0
      %1103 = vmatprep.subr.mxu0 0.0
      %1104 = vmatpush1.msra.mxu0 0.0
      %1105 = vmatprep.subr.mxu0 0.0
      %1106 = vmatpush1.msra.mxu0 0.0
      %1107 = vmatprep.subr.mxu0 0.0
      %1108 = vmatpush1.msra.mxu0 0.0
      %1109 = vmatprep.subr.mxu0 0.0
      %1110 = vmatpush1.msra.mxu0 0.0
      %1111 = vmatprep.subr.mxu0 0.0
      %1112 = vmatpush1.msra.mxu0 0.0
      %1113 = vmatprep.subr.mxu0 0.0
      %1114 = vmatpush1.msra.mxu0 0.0
      %1115 = vmatprep.subr.mxu0 0.0
      %1116 = vmatpush1.msra.mxu0 0.0
      %1117 = vmatprep.subr.mxu0 0.0
      %1118 = vmatpush1.msra.mxu0 0.0
      %1119 = vmatprep.subr.mxu0 0.0
      %1120 = vmatpush1.msra.mxu0 0.0
      %1121 = vmatprep.subr.mxu0 0.0
      %1122 = vmatpush1.msra.mxu0 0.0
      %1123 = vmatprep.subr.mxu0 0.0
      %1124 = vmatpush1.msra.mxu0 0.0
      %1125 = vmatprep.subr.mxu0 0.0
      %1126 = vmatpush1.msra.mxu0 0.0
      %1127 = vmatprep.subr.mxu0 0.0
      %1128 = vmatpush1.msra.mxu0 0.0
      %1129 = vmatprep.subr.mxu0 0.0
      %1130 = vmatpush1.msra.mxu0 0.0
      %1131 = vmatprep.mubr.f32.mxu0 0.0
      %1132 = vmatmul.mubr.f32.gmra.mrb[0].mxu0 %v1065
      %v1133 = vpop.f32.mrb[0].mxu0
      %v1134 = vadd.f32 0.0, %v1133
      %v1135 = vpop.f32.mrb[0].mxu0
      %1136 = vdwg.mxu0
      %v1137 = vadd.f32 %v851, %v1134
      %v1138 = vmul.f32 %v1137, %v357
      %s1139 = scalar_lea.vmem %s5, 32
      %v1140 = vld [vmem:[%s1139] sm:$0xff]
      %v1141 = vld [vmem:[%s1139 + $0x8] sm:$0xff]
      %v1142 = vld [vmem:[%s1139 + $0x10] sm:$0xff]
      %v1143 = vld [vmem:[%s1139 + $0x18] sm:$0xff]
      %v1145 = vsel %vm373, %v863, 0
      %1147 = vmatprep.subr.mxu0 0.0
      %1148 = vmatpush1.msra.mxu0 %v1140
      %1149 = vmatprep.subr.mxu0 0.0
      %1150 = vmatpush1.msra.mxu0 %v1141
      %1151 = vmatprep.subr.mxu0 0.0
      %1152 = vmatpush1.msra.mxu0 %v1142
      %1153 = vmatprep.subr.mxu0 0.0
      %1154 = vmatpush1.msra.mxu0 %v1143
      %1155 = vmatprep.subr.mxu0 0.0
      %1156 = vmatpush1.msra.mxu0 0.0
      %1157 = vmatprep.subr.mxu0 0.0
      %1158 = vmatpush1.msra.mxu0 0.0
      %1159 = vmatprep.subr.mxu0 0.0
      %1160 = vmatpush1.msra.mxu0 0.0
      %1161 = vmatprep.subr.mxu0 0.0
      %1162 = vmatpush1.msra.mxu0 0.0
      %1163 = vmatprep.subr.mxu0 0.0
      %1164 = vmatpush1.msra.mxu0 0.0
      %1165 = vmatprep.subr.mxu0 0.0
      %1166 = vmatpush1.msra.mxu0 0.0
      %1167 = vmatprep.subr.mxu0 0.0
      %1168 = vmatpush1.msra.mxu0 0.0
      %1169 = vmatprep.subr.mxu0 0.0
      %1170 = vmatpush1.msra.mxu0 0.0
      %1171 = vmatprep.subr.mxu0 0.0
      %1172 = vmatpush1.msra.mxu0 0.0
      %1173 = vmatprep.subr.mxu0 0.0
      %1174 = vmatpush1.msra.mxu0 0.0
      %1175 = vmatprep.subr.mxu0 0.0
      %1176 = vmatpush1.msra.mxu0 0.0
      %1177 = vmatprep.subr.mxu0 0.0
      %1178 = vmatpush1.msra.mxu0 0.0
      %1179 = vmatprep.subr.mxu0 0.0
      %1180 = vmatpush1.msra.mxu0 0.0
      %1181 = vmatprep.subr.mxu0 0.0
      %1182 = vmatpush1.msra.mxu0 0.0
      %1183 = vmatprep.subr.mxu0 0.0
      %1184 = vmatpush1.msra.mxu0 0.0
      %1185 = vmatprep.subr.mxu0 0.0
      %1186 = vmatpush1.msra.mxu0 0.0
      %1187 = vmatprep.subr.mxu0 0.0
      %1188 = vmatpush1.msra.mxu0 0.0
      %1189 = vmatprep.subr.mxu0 0.0
      %1190 = vmatpush1.msra.mxu0 0.0
      %1191 = vmatprep.subr.mxu0 0.0
      %1192 = vmatpush1.msra.mxu0 0.0
      %1193 = vmatprep.subr.mxu0 0.0
      %1194 = vmatpush1.msra.mxu0 0.0
      %1195 = vmatprep.subr.mxu0 0.0
      %1196 = vmatpush1.msra.mxu0 0.0
      %1197 = vmatprep.subr.mxu0 0.0
      %1198 = vmatpush1.msra.mxu0 0.0
      %1199 = vmatprep.subr.mxu0 0.0
      %1200 = vmatpush1.msra.mxu0 0.0
      %1201 = vmatprep.subr.mxu0 0.0
      %1202 = vmatpush1.msra.mxu0 0.0
      %1203 = vmatprep.subr.mxu0 0.0
      %1204 = vmatpush1.msra.mxu0 0.0
      %1205 = vmatprep.subr.mxu0 0.0
      %1206 = vmatpush1.msra.mxu0 0.0
      %1207 = vmatprep.subr.mxu0 0.0
      %1208 = vmatpush1.msra.mxu0 0.0
      %1209 = vmatprep.subr.mxu0 0.0
      %1210 = vmatpush1.msra.mxu0 0.0
      %1211 = vmatprep.mubr.f32.mxu0 0.0
      %1212 = vmatmul.mubr.f32.gmra.mrb[0].mxu0 %v1145
      %v1213 = vpop.f32.mrb[0].mxu0
      %v1214 = vadd.f32 0.0, %v1213
      %v1215 = vpop.f32.mrb[0].mxu0
      %1216 = vdwg.mxu0
      %v1217 = vld [vmem:[%s6 + $0x3] sm:$0x1]
      %v1218 = vlaneseq
      %v1219 = vshrl.u32 %v1218, 7
      %v1220 = vsub.s32 0, %v1219
      %v1221 = vrot.slane %v1217, %v1220
      %1223 = vrot.lane.b32.xlu0 %v1221, 96
      %v1224 = vpop.permute.xlu0 %1223
      %v1226 = vadd.f32 %v1214, %v1224
      %v1227 = vsel %vm458, %v1226, -inf
      %1228 = vmax.xlane.f32.xlu0 %v1227
      %v1229 = vpop.xlane.xlu0 %1228
      %v1230 = vsub.f32 %v1226, %v1229
      %v1231 = vmul.f32 %v1230, 1.442695
      %v1232 = vpow.pop %v1231
      %1234 = vrot.lane.b32.xlu0 %v1232, 32
      %v1235 = vpop.permute.xlu0 %1234
      %v1237 = vsel %vm469, %v1235, 0.0
      %1238 = vadd.xlane.f32.xlu0 %v1237
      %v1239 = vpop.xlane.xlu0 %1238
      %v1240 = vrcp.pop %v1239
      %v1241 = vmul.f32 %v1232, %v1240
      %1243 = vrot.lane.b32.xlu0 %v1214, 96
      %v1244 = vpop.permute.xlu0 %1243
      %v1245 = vsel %vm373, %v1214, 0
      %v1247 = vsel %vm373, %v1244, 0
      %1249 = vmatprep.subr.mxu0 0.0
      %1250 = vmatpush1.xpose.msra.mxu0 %v1247
      %1251 = vmatprep.subr.mxu0 0.0
      %1252 = vmatpush1.xpose.msra.mxu0 0.0
      %1253 = vmatprep.subr.mxu0 0.0
      %1254 = vmatpush1.xpose.msra.mxu0 0.0
      %1255 = vmatprep.subr.mxu0 0.0
      %1256 = vmatpush1.xpose.msra.mxu0 0.0
      %1257 = vmatprep.subr.mxu0 0.0
      %1258 = vmatpush1.xpose.msra.mxu0 0.0
      %1259 = vmatprep.subr.mxu0 0.0
      %1260 = vmatpush1.xpose.msra.mxu0 0.0
      %1261 = vmatprep.subr.mxu0 0.0
      %1262 = vmatpush1.xpose.msra.mxu0 0.0
      %1263 = vmatprep.subr.mxu0 0.0
      %1264 = vmatpush1.xpose.msra.mxu0 0.0
      %1265 = vmatprep.subr.mxu0 0.0
      %1266 = vmatpush1.xpose.msra.mxu0 0.0
      %1267 = vmatprep.subr.mxu0 0.0
      %1268 = vmatpush1.xpose.msra.mxu0 0.0
      %1269 = vmatprep.subr.mxu0 0.0
      %1270 = vmatpush1.xpose.msra.mxu0 0.0
      %1271 = vmatprep.subr.mxu0 0.0
      %1272 = vmatpush1.xpose.msra.mxu0 0.0
      %1273 = vmatprep.subr.mxu0 0.0
      %1274 = vmatpush1.xpose.msra.mxu0 0.0
      %1275 = vmatprep.subr.mxu0 0.0
      %1276 = vmatpush1.xpose.msra.mxu0 0.0
      %1277 = vmatprep.subr.mxu0 0.0
      %1278 = vmatpush1.xpose.msra.mxu0 0.0
      %1279 = vmatprep.subr.mxu0 0.0
      %1280 = vmatpush1.xpose.msra.mxu0 0.0
      %1281 = vmatprep.subr.mxu0 0.0
      %1282 = vmatpush1.xpose.msra.mxu0 0.0
      %1283 = vmatprep.subr.mxu0 0.0
      %1284 = vmatpush1.xpose.msra.mxu0 0.0
      %1285 = vmatprep.subr.mxu0 0.0
      %1286 = vmatpush1.xpose.msra.mxu0 0.0
      %1287 = vmatprep.subr.mxu0 0.0
      %1288 = vmatpush1.xpose.msra.mxu0 0.0
      %1289 = vmatprep.subr.mxu0 0.0
      %1290 = vmatpush1.xpose.msra.mxu0 0.0
      %1291 = vmatprep.subr.mxu0 0.0
      %1292 = vmatpush1.xpose.msra.mxu0 0.0
      %1293 = vmatprep.subr.mxu0 0.0
      %1294 = vmatpush1.xpose.msra.mxu0 0.0
      %1295 = vmatprep.subr.mxu0 0.0
      %1296 = vmatpush1.xpose.msra.mxu0 0.0
      %1297 = vmatprep.subr.mxu0 0.0
      %1298 = vmatpush1.xpose.msra.mxu0 0.0
      %1299 = vmatprep.subr.mxu0 0.0
      %1300 = vmatpush1.xpose.msra.mxu0 0.0
      %1301 = vmatprep.subr.mxu0 0.0
      %1302 = vmatpush1.xpose.msra.mxu0 0.0
      %1303 = vmatprep.subr.mxu0 0.0
      %1304 = vmatpush1.xpose.msra.mxu0 0.0
      %1305 = vmatprep.subr.mxu0 0.0
      %1306 = vmatpush1.xpose.msra.mxu0 0.0
      %1307 = vmatprep.subr.mxu0 0.0
      %1308 = vmatpush1.xpose.msra.mxu0 0.0
      %1309 = vmatprep.subr.mxu0 0.0
      %1310 = vmatpush1.xpose.msra.mxu0 0.0
      %1311 = vmatprep.subr.mxu0 0.0
      %1312 = vmatpush1.xpose.msra.mxu0 0.0
      %1313 = vmatprep.mubr.f32.mxu0 0.0
      %1314 = vmatmul.mubr.f32.gmra.mrb[0].mxu0 %v1245
      %v1315 = vpop.f32.mrb[0].mxu0
      %v1316 = vadd.f32 %v364, %v1315
      %v1317 = vpop.f32.mrb[0].mxu0
      %1318 = vdwg.mxu0
      %v1319 = vsel %vm552, %v1316, -inf
      %1320 = vmax.xlane.f32.xlu0 %v1319
      %v1321 = vpop.xlane.xlu0 %1320
      %v1322 = vsub.f32 %v1316, %v1321
      %v1323 = vmul.f32 %v1322, 1.442695
      %v1324 = vpow.pop %v1323
      %v1325 = vsel %vm552, %v1324, 0.0
      %1326 = vadd.xlane.f32.xlu0 %v1325
      %v1327 = vpop.xlane.xlu0 %1326
      %v1328 = vrcp.pop %v1327
      %v1329 = vmul.f32 %v1324, %v1328
      %1330 = vrot.lane.b32.xlu0 %v1214, 64
      %v1331 = vpop.permute.xlu0 %1330
      %v1334 = vsel %vm552, %v1329, 0
      %1336 = vmatprep.subr.mxu0 0.0
      %1337 = vmatpush1.msra.mxu0 %v1331
      %1338 = vmatprep.subr.mxu0 0.0
      %1339 = vmatpush1.msra.mxu0 0.0
      %1340 = vmatprep.subr.mxu0 0.0
      %1341 = vmatpush1.msra.mxu0 0.0
      %1342 = vmatprep.subr.mxu0 0.0
      %1343 = vmatpush1.msra.mxu0 0.0
      %1344 = vmatprep.subr.mxu0 0.0
      %1345 = vmatpush1.msra.mxu0 0.0
      %1346 = vmatprep.subr.mxu0 0.0
      %1347 = vmatpush1.msra.mxu0 0.0
      %1348 = vmatprep.subr.mxu0 0.0
      %1349 = vmatpush1.msra.mxu0 0.0
      %1350 = vmatprep.subr.mxu0 0.0
      %1351 = vmatpush1.msra.mxu0 0.0
      %1352 = vmatprep.subr.mxu0 0.0
      %1353 = vmatpush1.msra.mxu0 0.0
      %1354 = vmatprep.subr.mxu0 0.0
      %1355 = vmatpush1.msra.mxu0 0.0
      %1356 = vmatprep.subr.mxu0 0.0
      %1357 = vmatpush1.msra.mxu0 0.0
      %1358 = vmatprep.subr.mxu0 0.0
      %1359 = vmatpush1.msra.mxu0 0.0
      %1360 = vmatprep.subr.mxu0 0.0
      %1361 = vmatpush1.msra.mxu0 0.0
      %1362 = vmatprep.subr.mxu0 0.0
      %1363 = vmatpush1.msra.mxu0 0.0
      %1364 = vmatprep.subr.mxu0 0.0
      %1365 = vmatpush1.msra.mxu0 0.0
      %1366 = vmatprep.subr.mxu0 0.0
      %1367 = vmatpush1.msra.mxu0 0.0
      %1368 = vmatprep.subr.mxu0 0.0
      %1369 = vmatpush1.msra.mxu0 0.0
      %1370 = vmatprep.subr.mxu0 0.0
      %1371 = vmatpush1.msra.mxu0 0.0
      %1372 = vmatprep.subr.mxu0 0.0
      %1373 = vmatpush1.msra.mxu0 0.0
      %1374 = vmatprep.subr.mxu0 0.0
      %1375 = vmatpush1.msra.mxu0 0.0
      %1376 = vmatprep.subr.mxu0 0.0
      %1377 = vmatpush1.msra.mxu0 0.0
      %1378 = vmatprep.subr.mxu0 0.0
      %1379 = vmatpush1.msra.mxu0 0.0
      %1380 = vmatprep.subr.mxu0 0.0
      %1381 = vmatpush1.msra.mxu0 0.0
      %1382 = vmatprep.subr.mxu0 0.0
      %1383 = vmatpush1.msra.mxu0 0.0
      %1384 = vmatprep.subr.mxu0 0.0
      %1385 = vmatpush1.msra.mxu0 0.0
      %1386 = vmatprep.subr.mxu0 0.0
      %1387 = vmatpush1.msra.mxu0 0.0
      %1388 = vmatprep.subr.mxu0 0.0
      %1389 = vmatpush1.msra.mxu0 0.0
      %1390 = vmatprep.subr.mxu0 0.0
      %1391 = vmatpush1.msra.mxu0 0.0
      %1392 = vmatprep.subr.mxu0 0.0
      %1393 = vmatpush1.msra.mxu0 0.0
      %1394 = vmatprep.subr.mxu0 0.0
      %1395 = vmatpush1.msra.mxu0 0.0
      %1396 = vmatprep.subr.mxu0 0.0
      %1397 = vmatpush1.msra.mxu0 0.0
      %1398 = vmatprep.subr.mxu0 0.0
      %1399 = vmatpush1.msra.mxu0 0.0
      %1400 = vmatprep.mubr.f32.mxu0 0.0
      %1401 = vmatmul.mubr.f32.gmra.mrb[0].mxu0 %v1334
      %v1402 = vpop.f32.mrb[0].mxu0
      %v1403 = vadd.f32 0.0, %v1402
      %v1404 = vpop.f32.mrb[0].mxu0
      %1405 = vdwg.mxu0
      %v1406 = vadd.f32 %v863, %v1403
      %v1407 = vmul.f32 %v1406, %v357
      %v1408 = vadd.f32 %v972, 0.0
      %v1409 = vadd.f32 %v1408, %v1241
      %v1410 = vmul.f32 %v1409, 0.5
      %1412 = vset.pattern.permute.xlu0 96
      %1413 = vperm.xlu0 %1412, %v1410
      %v1414 = vpop.permute.xlu0 %1413
      %v1416 = vmul.f32 %v1414, %v1138
      %1417 = vset.pattern.permute.xlu0 97
      %1418 = vperm.xlu0 %1417, %v1410
      %v1419 = vpop.permute.xlu0 %1418
      %v1421 = vmul.f32 %v1419, %v1407
      %v1422 = vadd.f32 %v1416, %v1421
      %v1423 = vsel %vm373, %v1422, 0.0
      %1424 = vadd.xlane.f32.xlu0 %v1423
      %v1425 = vpop.xlane.xlu0 %1424
      %v1426 = vrcp.pop 32.0
      %v1427 = vmul.f32 %v1425, %v1426
      %v1428 = vsub.f32 %v1422, %v1427
      %v1429 = vmul.f32 %v1428, %v1428
      %v1430 = vsel %vm373, %v1429, 0.0
      %1431 = vadd.xlane.f32.xlu0 %v1430
      %v1432 = vpop.xlane.xlu0 %1431
      %v1433 = vmul.f32 %v1432, %v1426
      %v1434 = vadd.f32 %v1433, 1e-08
      %v1435 = vrsqrt.pop %v1434
      %v1436 = vmul.f32 %v1428, %v1435
      %v1437 = vld [vmem:[%s7] sm:$0x1]
      %v1438 = vlaneseq
      %v1439 = vshrl.u32 %v1438, 7
      %v1440 = vsub.s32 0, %v1439
      %v1441 = vrot.slane %v1437, %v1440
      %v1442 = vmul.f32 %v1436, %v1441
      %v1443 = vld [vmem:[%s7 + $0x1] sm:$0x1]
      %v1444 = vlaneseq
      %v1445 = vshrl.u32 %v1444, 7
      %v1446 = vsub.s32 0, %v1445
      %v1447 = vrot.slane %v1443, %v1446
      %v1448 = vadd.f32 %v1442, %v1447
      %v1449 = vld [vmem:[%s343] sm:$0xff]
      %v1450 = vmul.f32 %v1448, %v1449
      %v1451 = vsel %vm373, %v1450, 0.0
      %1452 = vadd.xlane.f32.xlu0 %v1451
      %v1453 = vpop.xlane.xlu0 %1452
      %v1454 = vld [vmem:[%s347] sm:$0xff]
      %v1455 = vmul.f32 %v1448, %v1454
      %v1456 = vsel %vm373, %v1455, 0.0
      %1457 = vadd.xlane.f32.xlu0 %v1456
      %v1458 = vpop.xlane.xlu0 %1457
      %1460 = vrot.lane.b32.xlu0 %v870, 2
      %v1461 = vpop.permute.xlu0 %1460
      %1463 = vrot.lane.b32.xlu0 %v1410, 38
      %v1464 = vpop.permute.xlu0 %1463
      %vm1466 = vcmask 7168
      %v1467 = vsel %vm1466, %v1453, %v1458
      %v1468 = vsel %vm469, %v1467, %v1461
      %vm1469 = vcmask 48128
      %v1470 = vsel %vm1469, %v1468, %v1464
      %1471 = vst.msk [vmem:[%s351] sm:$0xff] %vm552, %v1470
      %p1472 = scmp.lt.s32.totalorder %s19, 1
      %s1473 = scalar_select %p1472, %s19, 1
      %s1474 = smul.addr %s1473, 8
      %s1475 = scalar_lea.vmem %s8, %s1474
      // Predicated region
      $region53: #{casseq_forward.1} parent=51 // pred_check
        %p1476 = pneg %p225
      $region54: #{casseq_forward.1} parent=51 // pred_check_branch
        %1478 = sbr.rel (%p1476) target = $region56
      $region55: #{casseq_forward.1} parent=51 // pred_region
        _
      $region56: #{casseq_forward.1} parent=51 // pred_fallthru
        _
    $region52: #{casseq_forward.1} parent=5 // pred_fallthru
      _
    %p1479 = scmp.le.s32.totalorder 2, %s14
    // Predicated region
    $region57: #{casseq_forward.1} parent=5 // pred_check
      %p1480 = pneg %p1479
    $region58: #{casseq_forward.1} parent=5 // pred_check_branch
      %1482 = sbr.rel (%p1480) target = $region60
    $region59: #{casseq_forward.1} parent=5 // pred_region
      %s1483 = ssub.s32 %s14, 2
      // Predicated region
      $region61: #{casseq_forward.1} parent=59 // pred_check
        %p1484 = pneg %p231
      $region62: #{casseq_forward.1} parent=59 // pred_check_branch
        %1486 = sbr.rel (%p1484) target = $region64
      $region63: #{casseq_forward.1} parent=59 // pred_region
        %p1487 = scmp.lt.s32.totalorder %s20, 1
        %s1488 = scalar_select %p1487, %s20, 1
        %s1489 = smul.addr %s1488, 8
        %s1490 = scalar_lea.vmem %s8, %s1489
      $region64: #{casseq_forward.1} parent=59 // pred_fallthru
        _
    $region60: #{casseq_forward.1} parent=5 // pred_fallthru
      _
  $region6: #{casseq_forward.1} parent=0 // loop_footer
    %s18 = sadd.s32 1, %s14
  $region7: #{casseq_forward.1} parent=0 // loop_footer_branch
    %13 = sbr.rel target = $region3
  $region8: #{casseq_forward.1} parent=0 // loop_exit
    _

</llo_original>
